<compile_context>
chip_gen: v7x
topology: tpu7x:2x2x1
jax: 0.10.0
libtpu: 0.0.40
codegen_flags: <defaults>
</compile_context>

<pallas_src>
import functools

import jax
import jax.numpy as jnp
from jax.experimental import pallas as pl
from jax.experimental.pallas import tpu as pltpu

_LANES = 128      # vreg lane width: feature dims padded to multiples of this
_SUBLANES = 8     # sublane granularity
_BT_ALIGN = 16    # batch-tile alignment (keeps the in-kernel half-split 8-aligned)


def _round_up(n, m):
    return ((n + m - 1) // m) * m


# --------------------------------------------------------------------------- #
# One-time capability / hardware probes (cached).                              #
# --------------------------------------------------------------------------- #

@functools.lru_cache(maxsize=None)
def _vmem_capacity_bytes():
    """Per-core VMEM capacity; conservative 64 MiB (v7x) if the query fails."""
    get_info = getattr(pltpu, "get_tpu_info", None)
    if get_info is not None:
        try:  # hardware probe only -- never wraps the real kernel's compilation
            cap = int(getattr(get_info(), "vmem_capacity_bytes", 0))
            if cap > 0:
                return cap
        except Exception:
            pass
    return 64 * 1024 * 1024


@functools.lru_cache(maxsize=None)
def _supports_single_buffered_blocks():
    """Probe pipeline_mode=pl.Buffered(1) with a tiny dedicated kernel.

    The probe isolates the capability check so the real SAE kernel is never
    wrapped in a broad except and never silently recompiled on a second path.
    """
    if not hasattr(pl, "Buffered"):
        return False

    def _probe(w_ref, o_ref):
        o_ref[...] = w_ref[...] + 1.0

    try:  # capability probe only: real SAE kernel errors never reach this except
        w = jnp.zeros((_SUBLANES, _LANES), jnp.float32)
        out = pl.pallas_call(
            _probe,
            out_shape=jax.ShapeDtypeStruct((2 * _SUBLANES, _LANES), jnp.float32),
            grid=(2,),
            in_specs=[pl.BlockSpec((_SUBLANES, _LANES), lambda i: (0, 0),
                                   pipeline_mode=pl.Buffered(1))],
            out_specs=pl.BlockSpec((_SUBLANES, _LANES), lambda i: (i, 0)),
        )(w)
        jax.block_until_ready(out)
        return True
    except Exception:
        return False


# --------------------------------------------------------------------------- #
# Kernel                                                                       #
# --------------------------------------------------------------------------- #

def _sae_kernel(x_ref,
                w1_ref, b1_ref,
                w2_ref, b2_ref,
                w3_ref, b3_ref,
                w4_ref, b4_ref,
                o_ref, *, approx_sigmoid):
    """Whole SAE forward for one batch tile; weights resident in VMEM."""

    def layer(a, w_ref, b_ref):
        a = a.astype(w_ref.dtype)            # bf16 weights -> bf16 MXU feed
        return jnp.dot(a, w_ref[...],
                       preferred_element_type=jnp.float32) + b_ref[...]

    def sigmoid(z):
        # exp lives on the EUP; with approx=True the reciprocal is an EUP vrcp
        # too, so the activation stays off the VPU divide chain (biggest on v5e).
        return pl.reciprocal(1.0 + jnp.exp(-z), approx=approx_sigmoid)

    def chain(x):
        h = sigmoid(layer(x, w1_ref, b1_ref))
        h = sigmoid(layer(h, w2_ref, b2_ref))
        h = sigmoid(layer(h, w3_ref, b3_ref))
        return layer(h, w4_ref, b4_ref)

    bt = x_ref.shape[0]
    if bt % _BT_ALIGN == 0:
        # Two independent dependency chains in one basic block: the scheduler can
        # run one half's matmul (MXU) under the other half's sigmoid (EUP/VPU).
        half = bt // 2
        o_ref[:half, :] = chain(x_ref[:half, :]).astype(o_ref.dtype)
        o_ref[half:, :] = chain(x_ref[half:, :]).astype(o_ref.dtype)
    else:  # safety path (bt is always 16-aligned by construction)
        o_ref[...] = chain(x_ref[...]).astype(o_ref.dtype)


# --------------------------------------------------------------------------- #
# Wrapper                                                                      #
# --------------------------------------------------------------------------- #

@functools.partial(
    jax.jit,
    static_argnames=("batch_tile", "single_buffer_weights",
                     "approx_sigmoid", "vmem_cap"))
def _sae_forward_impl(x, w1, b1, w2, b2, w3, b3, w4, b4, *,
                      batch_tile, single_buffer_weights, approx_sigmoid, vmem_cap):
    B, inp = x.shape
    inp_p, hid_p = w1.shape          # already lane-padded by prepare_params
    half_p = w2.shape[1]

    # ---- batch tiling: 16-aligned, >= 2 grid steps whenever the batch allows
    #      it so both v7x TensorCores get work ("parallel" axis below). ----------
    bt = _round_up(min(batch_tile, _round_up(B, _BT_ALIGN)), _BT_ALIGN)
    if _round_up(B, bt) // bt < 2 and B > _BT_ALIGN:
        bt = _round_up(-(-B // 2), _BT_ALIGN)      # ceil(B/2), 16-aligned
    B_p = _round_up(B, bt)
    grid = (B_p // bt,)

    # ---- only x is padded per call (batch always; features only if needed) ----
    if B_p != B or inp_p != inp:
        x_in = jnp.pad(x, ((0, B_p - B), (0, inp_p - inp)))
    else:
        x_in = x

    # ---- VMEM budget & cost estimate (python ints at trace time) --------------
    x_isz = jnp.dtype(x.dtype).itemsize
    w_isz = jnp.dtype(w1.dtype).itemsize
    weight_elems = inp_p * hid_p + hid_p * half_p + half_p * hid_p + hid_p * inp_p
    bias_elems = hid_p + half_p + hid_p + inp_p
    wb_buffers = 1 if single_buffer_weights else 2
    io_bytes = 2 * bt * inp_p * x_isz * 2              # x tile + out tile, dbl-buffered
    act_bytes = bt * (hid_p + half_p + hid_p + inp_p) * 4   # live f32 activations
    vmem_est = ((weight_elems * w_isz + bias_elems * 4) * wb_buffers
                + io_bytes + act_bytes)
    usable = vmem_cap - max(vmem_cap // 8, 8 * 1024 * 1024)  # Mosaic scratch headroom
    vmem_limit = int(min(max(2 * vmem_est, 32 * 1024 * 1024), usable))

    flops = 2 * B_p * weight_elems
    transcendentals = 2 * B_p * (hid_p + half_p + hid_p)   # exp + reciprocal / sigmoid
    bytes_accessed = (2 * B_p * inp_p * x_isz              # x in + y out
                      + weight_elems * w_isz + bias_elems * 4)

    def const_spec(shape):
        index_map = lambda i: (0,) * len(shape)
        if single_buffer_weights:
            # Constant index_map -> fetched once; single buffer halves VMEM use
            # (decisive on v7x's 64 MiB VMEM for large weights).
            return pl.BlockSpec(shape, index_map, pipeline_mode=pl.Buffered(1))
        # Fallback: still fetched only once (block index never changes), just
        # double-buffered in VMEM.
        return pl.BlockSpec(shape, index_map)

    out_p = pl.pallas_call(
        functools.partial(_sae_kernel, approx_sigmoid=approx_sigmoid),
        out_shape=jax.ShapeDtypeStruct((B_p, inp_p), x.dtype),
        grid=grid,
        in_specs=[
            pl.BlockSpec((bt, inp_p), lambda i: (i, 0)),     # x batch tile
            const_spec(w1.shape), const_spec(b1.shape),
            const_spec(w2.shape), const_spec(b2.shape),
            const_spec(w3.shape), const_spec(b3.shape),
            const_spec(w4.shape), const_spec(b4.shape),
        ],
        out_specs=pl.BlockSpec((bt, inp_p), lambda i: (i, 0)),
        compiler_params=pltpu.CompilerParams(
            dimension_semantics=("parallel",),
            vmem_limit_bytes=vmem_limit),
        cost_estimate=pl.CostEstimate(
            flops=flops,
            transcendentals=transcendentals,
            bytes_accessed=bytes_accessed),
    )(x_in, w1, b1, w2, b2, w3, b3, w4, b4)

    if B_p == B and inp_p == inp:
        return out_p
    if inp_p == inp:
        return out_p[:B]          # batch-only slice (feature dim untouched)
    return out_p[:B, :inp]


def prepare_params(params):
    """ONE-TIME (load-time) lane-padding of weights/biases.

    Do this once when parameters are created/loaded -- never per forward call --
    so the padded weight copies are written to HBM exactly once.
    """
    def pad2(a, rows, cols, dtype=None):
        a = a if dtype is None else a.astype(dtype)
        return jnp.pad(a, ((0, rows - a.shape[0]), (0, cols - a.shape[1])))

    inp, hidden = params["w1"].shape
    half = params["w2"].shape[1]
    inp_p = _round_up(inp, _LANES)
    hid_p = _round_up(hidden, _LANES)
    half_p = _round_up(half, _LANES)
    f32 = jnp.float32
    return {
        "w1": pad2(params["w1"], inp_p, hid_p), "b1": pad2(params["b1"], 1, hid_p, f32),
        "w2": pad2(params["w2"], hid_p, half_p), "b2": pad2(params["b2"], 1, half_p, f32),
        "w3": pad2(params["w3"], half_p, hid_p), "b3": pad2(params["b3"], 1, hid_p, f32),
        "w4": pad2(params["w4"], hid_p, inp_p), "b4": pad2(params["b4"], 1, inp_p, f32),
    }


def sae_forward(x, prepared, *, batch_tile=512, approx_sigmoid=True):
    """x: (B, inp). prepared: output of prepare_params (padded weights/biases)."""
    return _sae_forward_impl(
        x,
        prepared["w1"], prepared["b1"], prepared["w2"], prepared["b2"],
        prepared["w3"], prepared["b3"], prepared["w4"], prepared["b4"],
        batch_tile=batch_tile,
        single_buffer_weights=_supports_single_buffered_blocks(),
        approx_sigmoid=approx_sigmoid,
        vmem_cap=_vmem_capacity_bytes(),
    )


def init_sae_params(key, inp, hidden, *, param_dtype=jnp.bfloat16):
    """U(-1/sqrt(fan_in), 1/sqrt(fan_in)) init mimicking nn.Linear.

    Weights are stored pre-transposed as (in_features, out_features) so the
    kernel computes x @ W directly.  bf16 is the default (full-rate MXU on
    v6e/v7x, half the weight bytes); biases stay float32 and are added to the
    f32 accumulator.
    """
    dims = [(inp, hidden), (hidden, hidden // 2), (hidden // 2, hidden), (hidden, inp)]
    params = {}
    keys = jax.random.split(key, 2 * len(dims))
    for n, (fan_in, fan_out) in enumerate(dims, start=1):
        bound = 1.0 / float(fan_in) ** 0.5
        wk, bk = keys[2 * (n - 1)], keys[2 * (n - 1) + 1]
        params[f"w{n}"] = jax.random.uniform(
            wk, (fan_in, fan_out), jnp.float32,
            minval=-bound, maxval=bound).astype(param_dtype)
        params[f"b{n}"] = jax.random.uniform(
            bk, (1, fan_out), jnp.float32, minval=-bound, maxval=bound)
    return params


def sae_reference(x, params):
    """Pure-JAX reference for correctness check (f32 math, exact matmuls)."""
    def layer(a, w, b):
        return jnp.dot(a.astype(jnp.float32), w.astype(jnp.float32),
                       precision=jax.lax.Precision.HIGHEST) + b.astype(jnp.float32)
    h = jax.nn.sigmoid(layer(x, params["w1"], params["b1"]))
    h = jax.nn.sigmoid(layer(h, params["w2"], params["b2"]))
    h = jax.nn.sigmoid(layer(h, params["w3"], params["b3"]))
    return layer(h, params["w4"], params["b4"])


if __name__ == "__main__":
    key = jax.random.PRNGKey(0)
    k_xa, k_pa, k_xb, k_pb = jax.random.split(key, 4)

    # ---- Config A: lane-aligned feature dim (no feature padding / slicing),
    #      f32 params, exact-reciprocal sigmoid -> tight correctness check.
    #      batch=200 -> 2 grid steps of 112 rows (forced even grid for v7x's
    #      two TensorCores), exercising the batch-pad tail and half-split.
    batch_a, inp_a, hidden_a = 200, 128, 64
    x_a = jax.random.normal(k_xa, (batch_a, inp_a), jnp.float32)
    params_a = init_sae_params(k_pa, inp_a, hidden_a, param_dtype=jnp.float32)
    prepared_a = prepare_params(params_a)
    out_a = jax.block_until_ready(sae_forward(x_a, prepared_a, approx_sigmoid=False))
    ref_a = sae_reference(x_a, params_a)
    assert out_a.shape == (batch_a, inp_a), out_a.shape
    assert jnp.allclose(out_a, ref_a, atol=1e-3, rtol=1e-3), "f32 mismatch vs reference"

    # ---- Config B: non-aligned feature dims (padded path), default bf16
    #      params (v6e/v7x MXU fast path), EUP-approx sigmoid -> loose check.
    batch_b, inp_b, hidden_b = 200, 32, 32
    x_b = jax.random.normal(k_xb, (batch_b, inp_b), jnp.float32)
    params_b = init_sae_params(k_pb, inp_b, hidden_b)          # bf16 default
    prepared_b = prepare_params(params_b)
    out_b = jax.block_until_ready(sae_forward(x_b, prepared_b))
    ref_b = sae_reference(x_b, params_b)
    assert out_b.shape == (batch_b, inp_b), out_b.shape
    assert jnp.allclose(out_b, ref_b, atol=5e-2, rtol=5e-2), "bf16 mismatch vs reference"

    # TODO(synk): nn.Dropout(0.1) is declared in the PyTorch module but never used
    # in forward(); intentionally not implemented.
    print("KERNEL_OK")
</pallas_src>

<mosaic_0001>
module attributes {stable_mosaic.version = 11 : i64} {
  func.func @_probe(%arg0: i32, %arg1: memref<8x128xf32, #tpu.memory_space<vmem>>, %arg2: memref<8x128xf32, #tpu.memory_space<vmem>>) attributes {dimension_semantics = [#tpu.dimension_semantics<arbitrary>], iteration_bounds = array<i64: 2>, scalar_prefetch = 0 : i64, scratch_operands = 0 : i64, tpu.core_type = #tpu.core_type<tc>, window_params = [{pipeline_mode = #tpu.pipeline_mode<synchronous>, transform_indices = @transform_0, window_bounds = array<i64: 8, 128>}, {transform_indices = @transform_1, window_bounds = array<i64: 8, 128>}]} {
    %c0 = arith.constant 0 : index
    %c0_0 = arith.constant 0 : index
    %0 = vector.load %arg1[%c0, %c0_0] : memref<8x128xf32, #tpu.memory_space<vmem>>, vector<8x128xf32>
    %cst = arith.constant 1.000000e+00 : f32
    %1 = vector.broadcast %cst : f32 to vector<8x128xf32>
    %2 = arith.addf %0, %1 : vector<8x128xf32>
    %c0_1 = arith.constant 0 : index
    %c0_2 = arith.constant 0 : index
    %3 = vector.load %arg2[%c0_1, %c0_2] : memref<8x128xf32, #tpu.memory_space<vmem>>, vector<8x128xf32>
    tpu.vector_store %arg2[%c0_1, %c0_2], %2 {strides = array<i32>} : memref<8x128xf32, #tpu.memory_space<vmem>>, vector<8x128xf32>,
    return
  }
  func.func @transform_0(%arg0: i32) -> (i32, i32) {
    %c0_i32 = arith.constant 0 : i32
    %c0_i32_0 = arith.constant 0 : i32
    %c0_i32_1 = arith.constant 0 : i32
    return %c0_i32, %c0_i32_0 : i32, i32
  }
  func.func @transform_1(%arg0: i32) -> (i32, i32) {
    %c0_i32 = arith.constant 0 : i32
    %c0_i32_0 = arith.constant 0 : i32
    return %arg0, %c0_i32 : i32, i32
  }
}

module attributes {stable_mosaic.version = 11 : i64} {
  func.func @_sae_kernel(%arg0: i32, %arg1: memref<112x128xf32, #tpu.memory_space<vmem>>, %arg2: memref<128x128xf32, #tpu.memory_space<vmem>>, %arg3: memref<1x128xf32, #tpu.memory_space<vmem>>, %arg4: memref<128x128xf32, #tpu.memory_space<vmem>>, %arg5: memref<1x128xf32, #tpu.memory_space<vmem>>, %arg6: memref<128x128xf32, #tpu.memory_space<vmem>>, %arg7: memref<1x128xf32, #tpu.memory_space<vmem>>, %arg8: memref<128x128xf32, #tpu.memory_space<vmem>>, %arg9: memref<1x128xf32, #tpu.memory_space<vmem>>, %arg10: memref<112x128xf32, #tpu.memory_space<vmem>>) attributes {dimension_semantics = [#tpu.dimension_semantics<parallel>], iteration_bounds = array<i64: 2>, scalar_prefetch = 0 : i64, scratch_operands = 0 : i64, tpu.core_type = #tpu.core_type<tc>, window_params = [{transform_indices = @transform_0, window_bounds = array<i64: 112, 128>}, {pipeline_mode = #tpu.pipeline_mode<synchronous>, transform_indices = @transform_1, window_bounds = array<i64: 128, 128>}, {pipeline_mode = #tpu.pipeline_mode<synchronous>, transform_indices = @transform_2, window_bounds = array<i64: 1, 128>}, {pipeline_mode = #tpu.pipeline_mode<synchronous>, transform_indices = @transform_3, window_bounds = array<i64: 128, 128>}, {pipeline_mode = #tpu.pipeline_mode<synchronous>, transform_indices = @transform_4, window_bounds = array<i64: 1, 128>}, {pipeline_mode = #tpu.pipeline_mode<synchronous>, transform_indices = @transform_5, window_bounds = array<i64: 128, 128>}, {pipeline_mode = #tpu.pipeline_mode<synchronous>, transform_indices = @transform_6, window_bounds = array<i64: 1, 128>}, {pipeline_mode = #tpu.pipeline_mode<synchronous>, transform_indices = @transform_7, window_bounds = array<i64: 128, 128>}, {pipeline_mode = #tpu.pipeline_mode<synchronous>, transform_indices = @transform_8, window_bounds = array<i64: 1, 128>}, {transform_indices = @transform_9, window_bounds = array<i64: 112, 128>}]} {
    %c0 = arith.constant 0 : index
    %c0_0 = arith.constant 0 : index
    %0 = vector.load %arg1[%c0, %c0_0] : memref<112x128xf32, #tpu.memory_space<vmem>>, vector<56x128xf32>
    %c0_1 = arith.constant 0 : index
    %c0_2 = arith.constant 0 : index
    %1 = vector.load %arg2[%c0_1, %c0_2] : memref<128x128xf32, #tpu.memory_space<vmem>>, vector<128x128xf32>
    %cst = arith.constant dense<0.000000e+00> : vector<56x128xf32>
    %2 = tpu.matmul %0, %1, %cst {dimension_numbers = #tpu.dot_dimension_numbers<[1], [0], [0], [1], [0, 0, 1, 1], [], []>} : vector<56x128xf32>, vector<128x128xf32>, vector<56x128xf32> -> vector<56x128xf32>
    %c0_3 = arith.constant 0 : index
    %c0_4 = arith.constant 0 : index
    %3 = vector.load %arg3[%c0_3, %c0_4] : memref<1x128xf32, #tpu.memory_space<vmem>>, vector<1x128xf32>
    %4 = vector.broadcast %3 : vector<1x128xf32> to vector<56x128xf32>
    %5 = arith.addf %2, %4 : vector<56x128xf32>
    %cst_5 = arith.constant 0.000000e+00 : f32
    %6 = vector.broadcast %cst_5 : f32 to vector<56x128xf32>
    %7 = arith.subf %6, %5 : vector<56x128xf32>
    %8 = math.exp %7 : vector<56x128xf32>
    %cst_6 = arith.constant 1.000000e+00 : f32
    %9 = vector.broadcast %cst_6 : f32 to vector<56x128xf32>
    %10 = arith.addf %9, %8 : vector<56x128xf32>
    %11 = tpu.reciprocal %10 : vector<56x128xf32> -> vector<56x128xf32>
    %c0_7 = arith.constant 0 : index
    %c0_8 = arith.constant 0 : index
    %12 = vector.load %arg4[%c0_7, %c0_8] : memref<128x128xf32, #tpu.memory_space<vmem>>, vector<128x128xf32>
    %cst_9 = arith.constant dense<0.000000e+00> : vector<56x128xf32>
    %13 = tpu.matmul %11, %12, %cst_9 {dimension_numbers = #tpu.dot_dimension_numbers<[1], [0], [0], [1], [0, 0, 1, 1], [], []>} : vector<56x128xf32>, vector<128x128xf32>, vector<56x128xf32> -> vector<56x128xf32>
    %c0_10 = arith.constant 0 : index
    %c0_11 = arith.constant 0 : index
    %14 = vector.load %arg5[%c0_10, %c0_11] : memref<1x128xf32, #tpu.memory_space<vmem>>, vector<1x128xf32>
    %15 = vector.broadcast %14 : vector<1x128xf32> to vector<56x128xf32>
    %16 = arith.addf %13, %15 : vector<56x128xf32>
    %cst_12 = arith.constant 0.000000e+00 : f32
    %17 = vector.broadcast %cst_12 : f32 to vector<56x128xf32>
    %18 = arith.subf %17, %16 : vector<56x128xf32>
    %19 = math.exp %18 : vector<56x128xf32>
    %cst_13 = arith.constant 1.000000e+00 : f32
    %20 = vector.broadcast %cst_13 : f32 to vector<56x128xf32>
    %21 = arith.addf %20, %19 : vector<56x128xf32>
    %22 = tpu.reciprocal %21 : vector<56x128xf32> -> vector<56x128xf32>
    %c0_14 = arith.constant 0 : index
    %c0_15 = arith.constant 0 : index
    %23 = vector.load %arg6[%c0_14, %c0_15] : memref<128x128xf32, #tpu.memory_space<vmem>>, vector<128x128xf32>
    %cst_16 = arith.constant dense<0.000000e+00> : vector<56x128xf32>
    %24 = tpu.matmul %22, %23, %cst_16 {dimension_numbers = #tpu.dot_dimension_numbers<[1], [0], [0], [1], [0, 0, 1, 1], [], []>} : vector<56x128xf32>, vector<128x128xf32>, vector<56x128xf32> -> vector<56x128xf32>
    %c0_17 = arith.constant 0 : index
    %c0_18 = arith.constant 0 : index
    %25 = vector.load %arg7[%c0_17, %c0_18] : memref<1x128xf32, #tpu.memory_space<vmem>>, vector<1x128xf32>
    %26 = vector.broadcast %25 : vector<1x128xf32> to vector<56x128xf32>
    %27 = arith.addf %24, %26 : vector<56x128xf32>
    %cst_19 = arith.constant 0.000000e+00 : f32
    %28 = vector.broadcast %cst_19 : f32 to vector<56x128xf32>
    %29 = arith.subf %28, %27 : vector<56x128xf32>
    %30 = math.exp %29 : vector<56x128xf32>
    %cst_20 = arith.constant 1.000000e+00 : f32
    %31 = vector.broadcast %cst_20 : f32 to vector<56x128xf32>
    %32 = arith.addf %31, %30 : vector<56x128xf32>
    %33 = tpu.reciprocal %32 : vector<56x128xf32> -> vector<56x128xf32>
    %c0_21 = arith.constant 0 : index
    %c0_22 = arith.constant 0 : index
    %34 = vector.load %arg8[%c0_21, %c0_22] : memref<128x128xf32, #tpu.memory_space<vmem>>, vector<128x128xf32>
    %cst_23 = arith.constant dense<0.000000e+00> : vector<56x128xf32>
    %35 = tpu.matmul %33, %34, %cst_23 {dimension_numbers = #tpu.dot_dimension_numbers<[1], [0], [0], [1], [0, 0, 1, 1], [], []>} : vector<56x128xf32>, vector<128x128xf32>, vector<56x128xf32> -> vector<56x128xf32>
    %c0_24 = arith.constant 0 : index
    %c0_25 = arith.constant 0 : index
    %36 = vector.load %arg9[%c0_24, %c0_25] : memref<1x128xf32, #tpu.memory_space<vmem>>, vector<1x128xf32>
    %37 = vector.broadcast %36 : vector<1x128xf32> to vector<56x128xf32>
    %38 = arith.addf %35, %37 : vector<56x128xf32>
    %c0_26 = arith.constant 0 : index
    %c0_27 = arith.constant 0 : index
    %39 = vector.load %arg10[%c0_26, %c0_27] : memref<112x128xf32, #tpu.memory_space<vmem>>, vector<56x128xf32>
    tpu.vector_store %arg10[%c0_26, %c0_27], %38 {strides = array<i32>} : memref<112x128xf32, #tpu.memory_space<vmem>>, vector<56x128xf32>,
    %c56 = arith.constant 56 : index
    %c0_28 = arith.constant 0 : index
    %40 = vector.load %arg1[%c56, %c0_28] : memref<112x128xf32, #tpu.memory_space<vmem>>, vector<56x128xf32>
    %c0_29 = arith.constant 0 : index
    %c0_30 = arith.constant 0 : index
    %41 = vector.load %arg2[%c0_29, %c0_30] : memref<128x128xf32, #tpu.memory_space<vmem>>, vector<128x128xf32>
    %cst_31 = arith.constant dense<0.000000e+00> : vector<56x128xf32>
    %42 = tpu.matmul %40, %41, %cst_31 {dimension_numbers = #tpu.dot_dimension_numbers<[1], [0], [0], [1], [0, 0, 1, 1], [], []>} : vector<56x128xf32>, vector<128x128xf32>, vector<56x128xf32> -> vector<56x128xf32>
    %c0_32 = arith.constant 0 : index
    %c0_33 = arith.constant 0 : index
    %43 = vector.load %arg3[%c0_32, %c0_33] : memref<1x128xf32, #tpu.memory_space<vmem>>, vector<1x128xf32>
    %44 = vector.broadcast %43 : vector<1x128xf32> to vector<56x128xf32>
    %45 = arith.addf %42, %44 : vector<56x128xf32>
    %cst_34 = arith.constant 0.000000e+00 : f32
    %46 = vector.broadcast %cst_34 : f32 to vector<56x128xf32>
    %47 = arith.subf %46, %45 : vector<56x128xf32>
    %48 = math.exp %47 : vector<56x128xf32>
    %cst_35 = arith.constant 1.000000e+00 : f32
    %49 = vector.broadcast %cst_35 : f32 to vector<56x128xf32>
    %50 = arith.addf %49, %48 : vector<56x128xf32>
    %51 = tpu.reciprocal %50 : vector<56x128xf32> -> vector<56x128xf32>
    %c0_36 = arith.constant 0 : index
    %c0_37 = arith.constant 0 : index
    %52 = vector.load %arg4[%c0_36, %c0_37] : memref<128x128xf32, #tpu.memory_space<vmem>>, vector<128x128xf32>
    %cst_38 = arith.constant dense<0.000000e+00> : vector<56x128xf32>
    %53 = tpu.matmul %51, %52, %cst_38 {dimension_numbers = #tpu.dot_dimension_numbers<[1], [0], [0], [1], [0, 0, 1, 1], [], []>} : vector<56x128xf32>, vector<128x128xf32>, vector<56x128xf32> -> vector<56x128xf32>
    %c0_39 = arith.constant 0 : index
    %c0_40 = arith.constant 0 : index
    %54 = vector.load %arg5[%c0_39, %c0_40] : memref<1x128xf32, #tpu.memory_space<vmem>>, vector<1x128xf32>
    %55 = vector.broadcast %54 : vector<1x128xf32> to vector<56x128xf32>
    %56 = arith.addf %53, %55 : vector<56x128xf32>
    %cst_41 = arith.constant 0.000000e+00 : f32
    %57 = vector.broadcast %cst_41 : f32 to vector<56x128xf32>
    %58 = arith.subf %57, %56 : vector<56x128xf32>
    %59 = math.exp %58 : vector<56x128xf32>
    %cst_42 = arith.constant 1.000000e+00 : f32
    %60 = vector.broadcast %cst_42 : f32 to vector<56x128xf32>
    %61 = arith.addf %60, %59 : vector<56x128xf32>
    %62 = tpu.reciprocal %61 : vector<56x128xf32> -> vector<56x128xf32>
    %c0_43 = arith.constant 0 : index
    %c0_44 = arith.constant 0 : index
    %63 = vector.load %arg6[%c0_43, %c0_44] : memref<128x128xf32, #tpu.memory_space<vmem>>, vector<128x128xf32>
    %cst_45 = arith.constant dense<0.000000e+00> : vector<56x128xf32>
    %64 = tpu.matmul %62, %63, %cst_45 {dimension_numbers = #tpu.dot_dimension_numbers<[1], [0], [0], [1], [0, 0, 1, 1], [], []>} : vector<56x128xf32>, vector<128x128xf32>, vector<56x128xf32> -> vector<56x128xf32>
    %c0_46 = arith.constant 0 : index
    %c0_47 = arith.constant 0 : index
    %65 = vector.load %arg7[%c0_46, %c0_47] : memref<1x128xf32, #tpu.memory_space<vmem>>, vector<1x128xf32>
    %66 = vector.broadcast %65 : vector<1x128xf32> to vector<56x128xf32>
    %67 = arith.addf %64, %66 : vector<56x128xf32>
    %cst_48 = arith.constant 0.000000e+00 : f32
    %68 = vector.broadcast %cst_48 : f32 to vector<56x128xf32>
    %69 = arith.subf %68, %67 : vector<56x128xf32>
    %70 = math.exp %69 : vector<56x128xf32>
    %cst_49 = arith.constant 1.000000e+00 : f32
    %71 = vector.broadcast %cst_49 : f32 to vector<56x128xf32>
    %72 = arith.addf %71, %70 : vector<56x128xf32>
    %73 = tpu.reciprocal %72 : vector<56x128xf32> -> vector<56x128xf32>
    %c0_50 = arith.constant 0 : index
    %c0_51 = arith.constant 0 : index
    %74 = vector.load %arg8[%c0_50, %c0_51] : memref<128x128xf32, #tpu.memory_space<vmem>>, vector<128x128xf32>
    %cst_52 = arith.constant dense<0.000000e+00> : vector<56x128xf32>
    %75 = tpu.matmul %73, %74, %cst_52 {dimension_numbers = #tpu.dot_dimension_numbers<[1], [0], [0], [1], [0, 0, 1, 1], [], []>} : vector<56x128xf32>, vector<128x128xf32>, vector<56x128xf32> -> vector<56x128xf32>
    %c0_53 = arith.constant 0 : index
    %c0_54 = arith.constant 0 : index
    %76 = vector.load %arg9[%c0_53, %c0_54] : memref<1x128xf32, #tpu.memory_space<vmem>>, vector<1x128xf32>
    %77 = vector.broadcast %76 : vector<1x128xf32> to vector<56x128xf32>
    %78 = arith.addf %75, %77 : vector<56x128xf32>
    %c56_55 = arith.constant 56 : index
    %c0_56 = arith.constant 0 : index
    %79 = vector.load %arg10[%c56_55, %c0_56] : memref<112x128xf32, #tpu.memory_space<vmem>>, vector<56x128xf32>
    tpu.vector_store %arg10[%c56_55, %c0_56], %78 {strides = array<i32>} : memref<112x128xf32, #tpu.memory_space<vmem>>, vector<56x128xf32>,
    return
  }
  func.func @transform_0(%arg0: i32) -> (i32, i32) {
    %c0_i32 = arith.constant 0 : i32
    %c0_i32_0 = arith.constant 0 : i32
    return %arg0, %c0_i32 : i32, i32
  }
  func.func @transform_1(%arg0: i32) -> (i32, i32) {
    %c0_i32 = arith.constant 0 : i32
    %c0_i32_0 = arith.constant 0 : i32
    %c0_i32_1 = arith.constant 0 : i32
    return %c0_i32, %c0_i32_0 : i32, i32
  }
  func.func @transform_2(%arg0: i32) -> (i32, i32) {
    %c0_i32 = arith.constant 0 : i32
    %c0_i32_0 = arith.constant 0 : i32
    %c0_i32_1 = arith.constant 0 : i32
    return %c0_i32, %c0_i32_0 : i32, i32
  }
  func.func @transform_3(%arg0: i32) -> (i32, i32) {
    %c0_i32 = arith.constant 0 : i32
    %c0_i32_0 = arith.constant 0 : i32
    %c0_i32_1 = arith.constant 0 : i32
    return %c0_i32, %c0_i32_0 : i32, i32
  }
  func.func @transform_4(%arg0: i32) -> (i32, i32) {
    %c0_i32 = arith.constant 0 : i32
    %c0_i32_0 = arith.constant 0 : i32
    %c0_i32_1 = arith.constant 0 : i32
    return %c0_i32, %c0_i32_0 : i32, i32
  }
  func.func @transform_5(%arg0: i32) -> (i32, i32) {
    %c0_i32 = arith.constant 0 : i32
    %c0_i32_0 = arith.constant 0 : i32
    %c0_i32_1 = arith.constant 0 : i32
    return %c0_i32, %c0_i32_0 : i32, i32
  }
  func.func @transform_6(%arg0: i32) -> (i32, i32) {
    %c0_i32 = arith.constant 0 : i32
    %c0_i32_0 = arith.constant 0 : i32
    %c0_i32_1 = arith.constant 0 : i32
    return %c0_i32, %c0_i32_0 : i32, i32
  }
  func.func @transform_7(%arg0: i32) -> (i32, i32) {
    %c0_i32 = arith.constant 0 : i32
    %c0_i32_0 = arith.constant 0 : i32
    %c0_i32_1 = arith.constant 0 : i32
    return %c0_i32, %c0_i32_0 : i32, i32
  }
  func.func @transform_8(%arg0: i32) -> (i32, i32) {
    %c0_i32 = arith.constant 0 : i32
    %c0_i32_0 = arith.constant 0 : i32
    %c0_i32_1 = arith.constant 0 : i32
    return %c0_i32, %c0_i32_0 : i32, i32
  }
  func.func @transform_9(%arg0: i32) -> (i32, i32) {
    %c0_i32 = arith.constant 0 : i32
    %c0_i32_0 = arith.constant 0 : i32
    return %arg0, %c0_i32 : i32, i32
  }
}

</mosaic_0001>

<llo_original>
// kernel: tpu_custom_call.1
$region0: #{tpu_custom_call.1}
  #allocation0 [shape = 'u32[]', space=smem, size = 0x4, offset = 0x4, fixed_abs, tag = 'smem constant byte address 0x4 - core index']
  #allocation1 [shape = 'u32[144,128]{1,0:T(1,128)}', space=vmem, size = 0x12000, scoped, tag = 'internal scratch']
  %s0 = inlined_call_operand.hbm [shape: f32[8,128], index: 0, kind: input, shape index: {}]
  %s1 = inlined_call_operand.hbm [shape: f32[16,128], index: 1, kind: output, shape index: {}]
  %s2 = sld [smem:[#allocation0]]
  $region41: #{tpu_custom_call.1} parent=0
    _
  %s4 = ssub.s32 1, %s2
  %s5 = scalar_select 0, %s4, %s2
  $region1: #{tpu_custom_call.1} parent=0
    #allocation2 [shape = 'u8[4096]{0}', space=vmem, size = 0x1000, scoped, tag = 'input window, operand 0, single buffered']
    #allocation3 [shape = 's32[2]{0}', space=sflag, size = 0x8, scoped, tag = 'scoped memory for tpu_custom_call.1']
    #allocation4 [shape = 's32[2]{0}', space=sflag, size = 0x8, scoped, tag = 'scoped memory for tpu_custom_call.1']
    #allocation5 [shape = 'u8[8192]{0}', space=vmem, size = 0x2000, scoped, tag = 'output window, operand 0']
    %6 = vsyncpa [#allocation3], 0
    %7 = vsyncpa [#allocation4], 0
    %s8 = scalar_lea.sflag [#allocation4], 1
    %9 = vsyncpa %s8, 0
    loop: start=0, step=1, limit=4
    $region2: #{tpu_custom_call.1} parent=1 // loop_pre_header
      _
    $region3: #{tpu_custom_call.1} parent=1 // loop_header
      %s11 = sphi 0, %s15
      %p12 = scmp.ge.s32.totalorder %s11, 4
      %s19 = sphi 0, %s19
      %s21 = sphi 0, %s19
      %s22 = sphi 0, %s21
      %s36 = sphi 0, %s22
      %s42 = sphi 0, %s44
      %s45 = sphi 0, %s42
      %s46 = sphi 0, %s45
      %s62 = sphi 0, %s46
    $region4: #{tpu_custom_call.1} parent=1 // loop_header_branch
      %14 = sbr.rel (%p12) target = $region8
    $region5: #{tpu_custom_call.1} parent=1 // loop_body
      %s16 = ssub.s32 %s11, 1
      %s17 = ssub.s32 %s11, 2
      %s18 = sadd.s32 %s11, 1
      %s20 = sadd.s32 %s19, 1
      %p23 = scmp.eq.s32.totalorder %s11, 1
      %p24 = scmp.ne.s32.totalorder %s19, %s21
      %p25 = scmp.eq.s32.totalorder %s11, 0
      %p26 = por %p24, %p25
      %p27 = scmp.ne.s32.totalorder %s19, %s21
      %p28 = scmp.eq.s32.totalorder %s16, 1
      %p29 = por %p27, %p28
      %p30 = scmp.ne.s32.totalorder %s21, %s22
      %p31 = scmp.eq.s32.totalorder %s16, 0
      %p32 = por %p30, %p31
      %p33 = scmp.ne.s32.totalorder %s21, %s22
      %p34 = scmp.eq.s32.totalorder %s17, 1
      %p35 = por %p33, %p34
      %p37 = scmp.ne.s32.totalorder %s22, %s36
      %p38 = scmp.eq.s32.totalorder %s17, 0
      %p39 = por %p37, %p38
      %s40 = ssub.s32 %s11, %s18
      %p41 = scmp.eq.s32.totalorder %s40, 0
      %s43 = sadd.s32 %s42, 1
      %s44 = scalar_select %p41, %s42, %s43
      %p47 = pneg %p41
      %p48 = scmp.eq.s32.totalorder %s11, 1
      %p49 = por %p47, %p48
      %p50 = scmp.ne.s32.totalorder %s42, %s45
      %p51 = scmp.eq.s32.totalorder %s11, 0
      %p52 = por %p50, %p51
      %p53 = scmp.ne.s32.totalorder %s42, %s45
      %p54 = scmp.eq.s32.totalorder %s16, 1
      %p55 = por %p53, %p54
      %p56 = scmp.ne.s32.totalorder %s45, %s46
      %p57 = scmp.eq.s32.totalorder %s16, 0
      %p58 = por %p56, %p57
      %p59 = scmp.ne.s32.totalorder %s45, %s46
      %p60 = scmp.eq.s32.totalorder %s17, 1
      %p61 = por %p59, %p60
      %p63 = scmp.ne.s32.totalorder %s46, %s62
      %p64 = scmp.eq.s32.totalorder %s17, 0
      %p65 = por %p63, %p64
      %p66 = scmp.le.s32.totalorder 1, %s11
      %p67 = scmp.lt.s32.totalorder %s11, 3
      %p68 = pnand %p66, %p67
      %p69 = pneg %p68
      // Predicated region
      $region9: #{tpu_custom_call.1} parent=5 // pred_check
        _
      $region10: #{tpu_custom_call.1} parent=5 // pred_check_branch
        %71 = sbr.rel (%p68) target = $region12
      $region11: #{tpu_custom_call.1} parent=5 // pred_region
        %s72 = ssub.s32 %s11, 1
        // Predicated region
        $region13: #{tpu_custom_call.1} parent=11 // pred_check
          %p73 = pneg %p32
        $region14: #{tpu_custom_call.1} parent=11 // pred_check_branch
          %75 = sbr.rel (%p73) target = $region16
        $region15: #{tpu_custom_call.1} parent=11 // pred_region
          %s77 = ssub.s32 128, 128
          %78 = vsyncadd [#allocation3], %s77
          %s80 = sshll.u32 [#allocation2], 4
          %s81 = int_to_ptr.vmem [resolvable:$true] %s80
          %83 = dma.hbm_to_vmem [thread:$0]  %s0, 128, %s81, [#allocation3]
        $region16: #{tpu_custom_call.1} parent=11 // pred_fallthru
          _
      $region12: #{tpu_custom_call.1} parent=5 // pred_fallthru
        _
      %p84 = scmp.lt.s32.totalorder %s11, 2
      // Predicated region
      $region17: #{tpu_custom_call.1} parent=5 // pred_check
        %p85 = pneg %p84
      $region18: #{tpu_custom_call.1} parent=5 // pred_check_branch
        %87 = sbr.rel (%p85) target = $region20
      $region19: #{tpu_custom_call.1} parent=5 // pred_region
        _
      $region20: #{tpu_custom_call.1} parent=5 // pred_fallthru
        _
      %p88 = scmp.le.s32.totalorder 1, %s11
      %p89 = scmp.lt.s32.totalorder %s11, 3
      %p90 = pnand %p88, %p89
      %p91 = pneg %p90
      // Predicated region
      $region21: #{tpu_custom_call.1} parent=5 // pred_check
        _
      $region22: #{tpu_custom_call.1} parent=5 // pred_check_branch
        %93 = sbr.rel (%p90) target = $region24
      $region23: #{tpu_custom_call.1} parent=5 // pred_region
        %s94 = ssub.s32 %s11, 1
        // Predicated region
        $region25: #{tpu_custom_call.1} parent=23 // pred_check
          %p95 = pneg %p32
        $region26: #{tpu_custom_call.1} parent=23 // pred_check_branch
          %97 = sbr.rel (%p95) target = $region28
        $region27: #{tpu_custom_call.1} parent=23 // pred_region
          %98 = dma.done [#allocation3], 128
        $region28: #{tpu_custom_call.1} parent=23 // pred_fallthru
          _
        %p99 = pneg %p32
        %p100 = pneg %p29
        %p101 = pneg %p58
        %p102 = pneg %p55
        %s103 = sand.u32 %s45, 1
        %s104 = scalar_lea.sflag [#allocation4], %s103
        %s105 = sand.u32 %s45, 1
        %s106 = smul.addr %s105, 8
        %s107 = scalar_lea.vmem [#allocation5], %s106
        %v108 = vld [vmem:[#allocation2] sm:$0xff]
        %v109 = vadd.f32 %v108, 1.0
        %110 = vst [vmem:[%s107] sm:$0xff] %v109
        %s111 = sand.u32 %s45, 1
        %s112 = scalar_lea.sflag [#allocation4], %s111
        %s113 = sand.u32 %s45, 1
        %s114 = smul.addr %s113, 8
        %s115 = scalar_lea.vmem [#allocation5], %s114
        // Predicated region
        $region29: #{tpu_custom_call.1} parent=23 // pred_check
          %p116 = pneg %p55
        $region30: #{tpu_custom_call.1} parent=23 // pred_check_branch
          %118 = sbr.rel (%p116) target = $region32
        $region31: #{tpu_custom_call.1} parent=23 // pred_region
          %s120 = ssub.s32 128, 128
          %121 = vsyncadd %s112, %s120
          %s122 = smul.addr %s16, 128
          %s123 = scalar_lea.hbm %s1, %s122
          %s125 = sshll.u32 %s115, 4
          %s126 = int_to_ptr.vmem [resolvable:$true] %s125
          %128 = dma.vmem_to_hbm [thread:$0]  %s126, 128, %s123, %s112
        $region32: #{tpu_custom_call.1} parent=23 // pred_fallthru
          _
      $region24: #{tpu_custom_call.1} parent=5 // pred_fallthru
        _
      %p129 = scmp.le.s32.totalorder 2, %s11
      // Predicated region
      $region33: #{tpu_custom_call.1} parent=5 // pred_check
        %p130 = pneg %p129
      $region34: #{tpu_custom_call.1} parent=5 // pred_check_branch
        %132 = sbr.rel (%p130) target = $region36
      $region35: #{tpu_custom_call.1} parent=5 // pred_region
        %s133 = ssub.s32 %s11, 2
        // Predicated region
        $region37: #{tpu_custom_call.1} parent=35 // pred_check
          %p134 = pneg %p61
        $region38: #{tpu_custom_call.1} parent=35 // pred_check_branch
          %136 = sbr.rel (%p134) target = $region40
        $region39: #{tpu_custom_call.1} parent=35 // pred_region
          %s137 = sand.u32 %s46, 1
          %s138 = scalar_lea.sflag [#allocation4], %s137
          %s139 = sand.u32 %s46, 1
          %s140 = smul.addr %s139, 8
          %s141 = scalar_lea.vmem [#allocation5], %s140
          %142 = dma.done %s138, 128
        $region40: #{tpu_custom_call.1} parent=35 // pred_fallthru
          _
      $region36: #{tpu_custom_call.1} parent=5 // pred_fallthru
        _
    $region6: #{tpu_custom_call.1} parent=1 // loop_footer
      %s15 = sadd.s32 1, %s11
    $region7: #{tpu_custom_call.1} parent=1 // loop_footer_branch
      %10 = sbr.rel target = $region3
    $region8: #{tpu_custom_call.1} parent=1 // loop_exit
      _
    %143 = vsyncpa [#allocation3], 1
    %s144 = scalar_lea.sflag [#allocation3], 1
    %145 = vsyncpa %s144, 1
    %146 = vsyncpa [#allocation4], 1
    %s147 = scalar_lea.sflag [#allocation4], 1
    %148 = vsyncpa %s147, 1

// kernel: _sae_forward_impl.1
$region0: #{_sae_forward_impl.1}
  #allocation0 [shape = 'u32[]', space=smem, size = 0x4, offset = 0x4, fixed_abs, tag = 'smem constant byte address 0x4 - core index']
  #allocation1 [shape = 'u32[144,128]{1,0:T(1,128)}', space=vmem, size = 0x12000, scoped, tag = 'internal scratch']
  %s0 = inlined_call_operand.vmem [shape: f32[224,128], index: 0, kind: input, shape index: {}]
  %s1 = inlined_call_operand.vmem [shape: f32[128,128], index: 1, kind: input, shape index: {}]
  %s2 = inlined_call_operand.vmem [shape: f32[1,128], index: 2, kind: input, shape index: {}]
  %s3 = inlined_call_operand.vmem [shape: f32[128,128], index: 3, kind: input, shape index: {}]
  %s4 = inlined_call_operand.vmem [shape: f32[1,128], index: 4, kind: input, shape index: {}]
  %s5 = inlined_call_operand.vmem [shape: f32[128,128], index: 5, kind: input, shape index: {}]
  %s6 = inlined_call_operand.vmem [shape: f32[1,128], index: 6, kind: input, shape index: {}]
  %s7 = inlined_call_operand.hbm [shape: f32[128,128], index: 7, kind: input, shape index: {}]
  %s8 = inlined_call_operand.vmem [shape: f32[1,128], index: 8, kind: input, shape index: {}]
  %s9 = inlined_call_operand.vmem [shape: f32[224,128], index: 9, kind: output, shape index: {}]
  %s10 = sld [smem:[#allocation0]]
  $region73: #{_sae_forward_impl.1} parent=0
    _
  %s12 = ssub.s32 1, %s10
  %s13 = scalar_select 0, %s12, %s10
  $region1: #{_sae_forward_impl.1} parent=0
    #allocation2 [shape = 'u8[65536]{0}', space=vmem, size = 0x10000, scoped, tag = 'input window, operand 7, single buffered']
    #allocation3 [shape = 's32[2]{0}', space=sflag, size = 0x8, scoped, tag = 'scoped memory for _sae_forward_impl.1']
    %14 = vsyncpa [#allocation3], 0
    loop: start=0, step=1, limit=4
    $region2: #{_sae_forward_impl.1} parent=1 // loop_pre_header
      _
    $region3: #{_sae_forward_impl.1} parent=1 // loop_header
      %s16 = sphi 0, %s20
      %p17 = scmp.ge.s32.totalorder %s16, 4
      %s26 = sphi 0, %s28
      %s29 = sphi 0, %s26
      %s30 = sphi 0, %s29
      %s46 = sphi 0, %s30
      %s50 = sphi 0, %s50
      %s52 = sphi 0, %s50
      %s53 = sphi 0, %s52
      %s67 = sphi 0, %s53
      %s71 = sphi 0, %s71
      %s73 = sphi 0, %s71
      %s74 = sphi 0, %s73
      %s88 = sphi 0, %s74
      %s92 = sphi 0, %s92
      %s94 = sphi 0, %s92
      %s95 = sphi 0, %s94
      %s109 = sphi 0, %s95
      %s113 = sphi 0, %s113
      %s115 = sphi 0, %s113
      %s116 = sphi 0, %s115
      %s130 = sphi 0, %s116
      %s134 = sphi 0, %s134
      %s136 = sphi 0, %s134
      %s137 = sphi 0, %s136
      %s151 = sphi 0, %s137
      %s155 = sphi 0, %s155
      %s157 = sphi 0, %s155
      %s158 = sphi 0, %s157
      %s172 = sphi 0, %s158
      %s176 = sphi 0, %s176
      %s178 = sphi 0, %s176
      %s179 = sphi 0, %s178
      %s193 = sphi 0, %s179
      %s197 = sphi 0, %s197
      %s199 = sphi 0, %s197
      %s200 = sphi 0, %s199
      %s214 = sphi 0, %s200
      %s220 = sphi 0, %s222
      %s223 = sphi 0, %s220
      %s224 = sphi 0, %s223
      %s240 = sphi 0, %s224
    $region4: #{_sae_forward_impl.1} parent=1 // loop_header_branch
      %19 = sbr.rel (%p17) target = $region8
    $region5: #{_sae_forward_impl.1} parent=1 // loop_body
      %s21 = ssub.s32 %s16, 1
      %s22 = ssub.s32 %s16, 2
      %s23 = sadd.s32 %s16, 1
      %s24 = ssub.s32 %s16, %s23
      %p25 = scmp.eq.s32.totalorder %s24, 0
      %s27 = sadd.s32 %s26, 1
      %s28 = scalar_select %p25, %s26, %s27
      %p31 = pneg %p25
      %p32 = scmp.eq.s32.totalorder %s16, 1
      %p33 = por %p31, %p32
      %p34 = scmp.ne.s32.totalorder %s26, %s29
      %p35 = scmp.eq.s32.totalorder %s16, 0
      %p36 = por %p34, %p35
      %p37 = scmp.ne.s32.totalorder %s26, %s29
      %p38 = scmp.eq.s32.totalorder %s21, 1
      %p39 = por %p37, %p38
      %p40 = scmp.ne.s32.totalorder %s29, %s30
      %p41 = scmp.eq.s32.totalorder %s21, 0
      %p42 = por %p40, %p41
      %p43 = scmp.ne.s32.totalorder %s29, %s30
      %p44 = scmp.eq.s32.totalorder %s22, 1
      %p45 = por %p43, %p44
      %p47 = scmp.ne.s32.totalorder %s30, %s46
      %p48 = scmp.eq.s32.totalorder %s22, 0
      %p49 = por %p47, %p48
      %s51 = sadd.s32 %s50, 1
      %p54 = scmp.eq.s32.totalorder %s16, 1
      %p55 = scmp.ne.s32.totalorder %s50, %s52
      %p56 = scmp.eq.s32.totalorder %s16, 0
      %p57 = por %p55, %p56
      %p58 = scmp.ne.s32.totalorder %s50, %s52
      %p59 = scmp.eq.s32.totalorder %s21, 1
      %p60 = por %p58, %p59
      %p61 = scmp.ne.s32.totalorder %s52, %s53
      %p62 = scmp.eq.s32.totalorder %s21, 0
      %p63 = por %p61, %p62
      %p64 = scmp.ne.s32.totalorder %s52, %s53
      %p65 = scmp.eq.s32.totalorder %s22, 1
      %p66 = por %p64, %p65
      %p68 = scmp.ne.s32.totalorder %s53, %s67
      %p69 = scmp.eq.s32.totalorder %s22, 0
      %p70 = por %p68, %p69
      %s72 = sadd.s32 %s71, 1
      %p75 = scmp.eq.s32.totalorder %s16, 1
      %p76 = scmp.ne.s32.totalorder %s71, %s73
      %p77 = scmp.eq.s32.totalorder %s16, 0
      %p78 = por %p76, %p77
      %p79 = scmp.ne.s32.totalorder %s71, %s73
      %p80 = scmp.eq.s32.totalorder %s21, 1
      %p81 = por %p79, %p80
      %p82 = scmp.ne.s32.totalorder %s73, %s74
      %p83 = scmp.eq.s32.totalorder %s21, 0
      %p84 = por %p82, %p83
      %p85 = scmp.ne.s32.totalorder %s73, %s74
      %p86 = scmp.eq.s32.totalorder %s22, 1
      %p87 = por %p85, %p86
      %p89 = scmp.ne.s32.totalorder %s74, %s88
      %p90 = scmp.eq.s32.totalorder %s22, 0
      %p91 = por %p89, %p90
      %s93 = sadd.s32 %s92, 1
      %p96 = scmp.eq.s32.totalorder %s16, 1
      %p97 = scmp.ne.s32.totalorder %s92, %s94
      %p98 = scmp.eq.s32.totalorder %s16, 0
      %p99 = por %p97, %p98
      %p100 = scmp.ne.s32.totalorder %s92, %s94
      %p101 = scmp.eq.s32.totalorder %s21, 1
      %p102 = por %p100, %p101
      %p103 = scmp.ne.s32.totalorder %s94, %s95
      %p104 = scmp.eq.s32.totalorder %s21, 0
      %p105 = por %p103, %p104
      %p106 = scmp.ne.s32.totalorder %s94, %s95
      %p107 = scmp.eq.s32.totalorder %s22, 1
      %p108 = por %p106, %p107
      %p110 = scmp.ne.s32.totalorder %s95, %s109
      %p111 = scmp.eq.s32.totalorder %s22, 0
      %p112 = por %p110, %p111
      %s114 = sadd.s32 %s113, 1
      %p117 = scmp.eq.s32.totalorder %s16, 1
      %p118 = scmp.ne.s32.totalorder %s113, %s115
      %p119 = scmp.eq.s32.totalorder %s16, 0
      %p120 = por %p118, %p119
      %p121 = scmp.ne.s32.totalorder %s113, %s115
      %p122 = scmp.eq.s32.totalorder %s21, 1
      %p123 = por %p121, %p122
      %p124 = scmp.ne.s32.totalorder %s115, %s116
      %p125 = scmp.eq.s32.totalorder %s21, 0
      %p126 = por %p124, %p125
      %p127 = scmp.ne.s32.totalorder %s115, %s116
      %p128 = scmp.eq.s32.totalorder %s22, 1
      %p129 = por %p127, %p128
      %p131 = scmp.ne.s32.totalorder %s116, %s130
      %p132 = scmp.eq.s32.totalorder %s22, 0
      %p133 = por %p131, %p132
      %s135 = sadd.s32 %s134, 1
      %p138 = scmp.eq.s32.totalorder %s16, 1
      %p139 = scmp.ne.s32.totalorder %s134, %s136
      %p140 = scmp.eq.s32.totalorder %s16, 0
      %p141 = por %p139, %p140
      %p142 = scmp.ne.s32.totalorder %s134, %s136
      %p143 = scmp.eq.s32.totalorder %s21, 1
      %p144 = por %p142, %p143
      %p145 = scmp.ne.s32.totalorder %s136, %s137
      %p146 = scmp.eq.s32.totalorder %s21, 0
      %p147 = por %p145, %p146
      %p148 = scmp.ne.s32.totalorder %s136, %s137
      %p149 = scmp.eq.s32.totalorder %s22, 1
      %p150 = por %p148, %p149
      %p152 = scmp.ne.s32.totalorder %s137, %s151
      %p153 = scmp.eq.s32.totalorder %s22, 0
      %p154 = por %p152, %p153
      %s156 = sadd.s32 %s155, 1
      %p159 = scmp.eq.s32.totalorder %s16, 1
      %p160 = scmp.ne.s32.totalorder %s155, %s157
      %p161 = scmp.eq.s32.totalorder %s16, 0
      %p162 = por %p160, %p161
      %p163 = scmp.ne.s32.totalorder %s155, %s157
      %p164 = scmp.eq.s32.totalorder %s21, 1
      %p165 = por %p163, %p164
      %p166 = scmp.ne.s32.totalorder %s157, %s158
      %p167 = scmp.eq.s32.totalorder %s21, 0
      %p168 = por %p166, %p167
      %p169 = scmp.ne.s32.totalorder %s157, %s158
      %p170 = scmp.eq.s32.totalorder %s22, 1
      %p171 = por %p169, %p170
      %p173 = scmp.ne.s32.totalorder %s158, %s172
      %p174 = scmp.eq.s32.totalorder %s22, 0
      %p175 = por %p173, %p174
      %s177 = sadd.s32 %s176, 1
      %p180 = scmp.eq.s32.totalorder %s16, 1
      %p181 = scmp.ne.s32.totalorder %s176, %s178
      %p182 = scmp.eq.s32.totalorder %s16, 0
      %p183 = por %p181, %p182
      %p184 = scmp.ne.s32.totalorder %s176, %s178
      %p185 = scmp.eq.s32.totalorder %s21, 1
      %p186 = por %p184, %p185
      %p187 = scmp.ne.s32.totalorder %s178, %s179
      %p188 = scmp.eq.s32.totalorder %s21, 0
      %p189 = por %p187, %p188
      %p190 = scmp.ne.s32.totalorder %s178, %s179
      %p191 = scmp.eq.s32.totalorder %s22, 1
      %p192 = por %p190, %p191
      %p194 = scmp.ne.s32.totalorder %s179, %s193
      %p195 = scmp.eq.s32.totalorder %s22, 0
      %p196 = por %p194, %p195
      %s198 = sadd.s32 %s197, 1
      %p201 = scmp.eq.s32.totalorder %s16, 1
      %p202 = scmp.ne.s32.totalorder %s197, %s199
      %p203 = scmp.eq.s32.totalorder %s16, 0
      %p204 = por %p202, %p203
      %p205 = scmp.ne.s32.totalorder %s197, %s199
      %p206 = scmp.eq.s32.totalorder %s21, 1
      %p207 = por %p205, %p206
      %p208 = scmp.ne.s32.totalorder %s199, %s200
      %p209 = scmp.eq.s32.totalorder %s21, 0
      %p210 = por %p208, %p209
      %p211 = scmp.ne.s32.totalorder %s199, %s200
      %p212 = scmp.eq.s32.totalorder %s22, 1
      %p213 = por %p211, %p212
      %p215 = scmp.ne.s32.totalorder %s200, %s214
      %p216 = scmp.eq.s32.totalorder %s22, 0
      %p217 = por %p215, %p216
      %s218 = ssub.s32 %s16, %s23
      %p219 = scmp.eq.s32.totalorder %s218, 0
      %s221 = sadd.s32 %s220, 1
      %s222 = scalar_select %p219, %s220, %s221
      %p225 = pneg %p219
      %p226 = scmp.eq.s32.totalorder %s16, 1
      %p227 = por %p225, %p226
      %p228 = scmp.ne.s32.totalorder %s220, %s223
      %p229 = scmp.eq.s32.totalorder %s16, 0
      %p230 = por %p228, %p229
      %p231 = scmp.ne.s32.totalorder %s220, %s223
      %p232 = scmp.eq.s32.totalorder %s21, 1
      %p233 = por %p231, %p232
      %p234 = scmp.ne.s32.totalorder %s223, %s224
      %p235 = scmp.eq.s32.totalorder %s21, 0
      %p236 = por %p234, %p235
      %p237 = scmp.ne.s32.totalorder %s223, %s224
      %p238 = scmp.eq.s32.totalorder %s22, 1
      %p239 = por %p237, %p238
      %p241 = scmp.ne.s32.totalorder %s224, %s240
      %p242 = scmp.eq.s32.totalorder %s22, 0
      %p243 = por %p241, %p242
      %p244 = scmp.le.s32.totalorder 1, %s16
      %p245 = scmp.lt.s32.totalorder %s16, 3
      %p246 = pnand %p244, %p245
      %p247 = pneg %p246
      // Predicated region
      $region9: #{_sae_forward_impl.1} parent=5 // pred_check
        _
      $region10: #{_sae_forward_impl.1} parent=5 // pred_check_branch
        %249 = sbr.rel (%p246) target = $region12
      $region11: #{_sae_forward_impl.1} parent=5 // pred_region
        %s250 = ssub.s32 %s16, 1
        // Predicated region
        $region13: #{_sae_forward_impl.1} parent=11 // pred_check
          %p251 = pneg %p63
        $region14: #{_sae_forward_impl.1} parent=11 // pred_check_branch
          %253 = sbr.rel (%p251) target = $region16
        $region15: #{_sae_forward_impl.1} parent=11 // pred_region
          _
        $region16: #{_sae_forward_impl.1} parent=11 // pred_fallthru
          _
        // Predicated region
        $region17: #{_sae_forward_impl.1} parent=11 // pred_check
          %p254 = pneg %p84
        $region18: #{_sae_forward_impl.1} parent=11 // pred_check_branch
          %256 = sbr.rel (%p254) target = $region20
        $region19: #{_sae_forward_impl.1} parent=11 // pred_region
          _
        $region20: #{_sae_forward_impl.1} parent=11 // pred_fallthru
          _
        // Predicated region
        $region21: #{_sae_forward_impl.1} parent=11 // pred_check
          %p257 = pneg %p105
        $region22: #{_sae_forward_impl.1} parent=11 // pred_check_branch
          %259 = sbr.rel (%p257) target = $region24
        $region23: #{_sae_forward_impl.1} parent=11 // pred_region
          _
        $region24: #{_sae_forward_impl.1} parent=11 // pred_fallthru
          _
        // Predicated region
        $region25: #{_sae_forward_impl.1} parent=11 // pred_check
          %p260 = pneg %p126
        $region26: #{_sae_forward_impl.1} parent=11 // pred_check_branch
          %262 = sbr.rel (%p260) target = $region28
        $region27: #{_sae_forward_impl.1} parent=11 // pred_region
          _
        $region28: #{_sae_forward_impl.1} parent=11 // pred_fallthru
          _
        // Predicated region
        $region29: #{_sae_forward_impl.1} parent=11 // pred_check
          %p263 = pneg %p147
        $region30: #{_sae_forward_impl.1} parent=11 // pred_check_branch
          %265 = sbr.rel (%p263) target = $region32
        $region31: #{_sae_forward_impl.1} parent=11 // pred_region
          _
        $region32: #{_sae_forward_impl.1} parent=11 // pred_fallthru
          _
        // Predicated region
        $region33: #{_sae_forward_impl.1} parent=11 // pred_check
          %p266 = pneg %p168
        $region34: #{_sae_forward_impl.1} parent=11 // pred_check_branch
          %268 = sbr.rel (%p266) target = $region36
        $region35: #{_sae_forward_impl.1} parent=11 // pred_region
          _
        $region36: #{_sae_forward_impl.1} parent=11 // pred_fallthru
          _
        // Predicated region
        $region37: #{_sae_forward_impl.1} parent=11 // pred_check
          %p269 = pneg %p189
        $region38: #{_sae_forward_impl.1} parent=11 // pred_check_branch
          %271 = sbr.rel (%p269) target = $region40
        $region39: #{_sae_forward_impl.1} parent=11 // pred_region
          %s273 = ssub.s32 2048, 2048
          %274 = vsyncadd [#allocation3], %s273
          %s275 = sshll.u32 [#allocation2], 4
          %s276 = int_to_ptr.vmem [resolvable:$true] %s275
          %281 = dma.hbm_to_vmem [thread:$0]  %s7, 2048, %s276, [#allocation3], 128, 128, 8
        $region40: #{_sae_forward_impl.1} parent=11 // pred_fallthru
          _
        // Predicated region
        $region41: #{_sae_forward_impl.1} parent=11 // pred_check
          %p282 = pneg %p210
        $region42: #{_sae_forward_impl.1} parent=11 // pred_check_branch
          %284 = sbr.rel (%p282) target = $region44
        $region43: #{_sae_forward_impl.1} parent=11 // pred_region
          _
        $region44: #{_sae_forward_impl.1} parent=11 // pred_fallthru
          _
      $region12: #{_sae_forward_impl.1} parent=5 // pred_fallthru
        _
      %p285 = scmp.lt.s32.totalorder %s16, 2
      // Predicated region
      $region45: #{_sae_forward_impl.1} parent=5 // pred_check
        %p286 = pneg %p285
      $region46: #{_sae_forward_impl.1} parent=5 // pred_check_branch
        %288 = sbr.rel (%p286) target = $region48
      $region47: #{_sae_forward_impl.1} parent=5 // pred_region
        // Predicated region
        $region49: #{_sae_forward_impl.1} parent=47 // pred_check
          %p289 = pneg %p36
        $region50: #{_sae_forward_impl.1} parent=47 // pred_check_branch
          %291 = sbr.rel (%p289) target = $region52
        $region51: #{_sae_forward_impl.1} parent=47 // pred_region
          %s292 = smul.u32 14, %s16
          %p293 = scmp.lt.s32.totalorder %s292, 27
          %s294 = scalar_select %p293, %s292, 27
          %s295 = smul.addr %s294, 8
          %s296 = scalar_lea.vmem %s0, %s295
          %s297 = smul.u32 14, %s16
        $region52: #{_sae_forward_impl.1} parent=47 // pred_fallthru
          _
      $region48: #{_sae_forward_impl.1} parent=5 // pred_fallthru
        _
      %p298 = scmp.le.s32.totalorder 1, %s16
      %p299 = scmp.lt.s32.totalorder %s16, 3
      %p300 = pnand %p298, %p299
      %p301 = pneg %p300
      // Predicated region
      $region53: #{_sae_forward_impl.1} parent=5 // pred_check
        _
      $region54: #{_sae_forward_impl.1} parent=5 // pred_check_branch
        %303 = sbr.rel (%p300) target = $region56
      $region55: #{_sae_forward_impl.1} parent=5 // pred_region
        %s304 = ssub.s32 %s16, 1
        // Predicated region
        $region57: #{_sae_forward_impl.1} parent=55 // pred_check
          %p305 = pneg %p189
        $region58: #{_sae_forward_impl.1} parent=55 // pred_check_branch
          %307 = sbr.rel (%p305) target = $region60
        $region59: #{_sae_forward_impl.1} parent=55 // pred_region
          %308 = dma.done [#allocation3], 2048
        $region60: #{_sae_forward_impl.1} parent=55 // pred_fallthru
          _
        %s309 = smul.u32 14, %s21
        %p310 = scmp.lt.s32.totalorder %s309, 27
        %s311 = scalar_select %p310, %s309, 27
        %s312 = smul.addr %s311, 8
        %s313 = scalar_lea.vmem %s0, %s312
        %p314 = pneg %p42
        %p315 = pneg %p39
        %p316 = pneg %p63
        %p317 = pneg %p60
        %p318 = pneg %p84
        %p319 = pneg %p81
        %p320 = pneg %p105
        %p321 = pneg %p102
        %p322 = pneg %p126
        %p323 = pneg %p123
        %p324 = pneg %p147
        %p325 = pneg %p144
        %p326 = pneg %p168
        %p327 = pneg %p165
        %p328 = pneg %p189
        %p329 = pneg %p186
        %p330 = pneg %p210
        %p331 = pneg %p207
        %p332 = pneg %p236
        %p333 = pneg %p233
        %s334 = smul.u32 14, %s21
        %p335 = scmp.lt.s32.totalorder %s334, 27
        %s336 = scalar_select %p335, %s334, 27
        %s337 = smul.addr %s336, 8
        %s338 = scalar_lea.vmem %s9, %s337
        %s339 = smul.u32 14, %s21
        %p340 = scmp.lt.s32.totalorder %s339, 27
        %s341 = scalar_select %p340, %s339, 27
        %s342 = smul.addr %s341, 8
        %s343 = scalar_lea.vmem %s0, %s342
        %s344 = smul.u32 14, %s21
        %s345 = smul.u32 14, %s21
        %p346 = scmp.lt.s32.totalorder %s345, 27
        %s347 = scalar_select %p346, %s345, 27
        %s348 = smul.addr %s347, 8
        %s349 = scalar_lea.vmem %s9, %s348
        %s350 = smul.u32 14, %s21
        %v351 = vld [vmem:[%s343] sm:$0xff]
        %v352 = vld [vmem:[%s343 + $0x8] sm:$0xff]
        %v353 = vld [vmem:[%s343 + $0x10] sm:$0xff]
        %v354 = vld [vmem:[%s343 + $0x18] sm:$0xff]
        %v355 = vld [vmem:[%s343 + $0x20] sm:$0xff]
        %v356 = vld [vmem:[%s343 + $0x28] sm:$0xff]
        %v357 = vld [vmem:[%s343 + $0x30] sm:$0xff]
        %v358 = vld [vmem:[%s1] sm:$0xff]
        %v359 = vld [vmem:[%s1 + $0x8] sm:$0xff]
        %v360 = vld [vmem:[%s1 + $0x10] sm:$0xff]
        %v361 = vld [vmem:[%s1 + $0x18] sm:$0xff]
        %v362 = vld [vmem:[%s1 + $0x20] sm:$0xff]
        %v363 = vld [vmem:[%s1 + $0x28] sm:$0xff]
        %v364 = vld [vmem:[%s1 + $0x30] sm:$0xff]
        %v365 = vld [vmem:[%s1 + $0x38] sm:$0xff]
        %v366 = vld [vmem:[%s1 + $0x40] sm:$0xff]
        %v367 = vld [vmem:[%s1 + $0x48] sm:$0xff]
        %v368 = vld [vmem:[%s1 + $0x50] sm:$0xff]
        %v369 = vld [vmem:[%s1 + $0x58] sm:$0xff]
        %v370 = vld [vmem:[%s1 + $0x60] sm:$0xff]
        %v371 = vld [vmem:[%s1 + $0x68] sm:$0xff]
        %v372 = vld [vmem:[%s1 + $0x70] sm:$0xff]
        %v373 = vld [vmem:[%s1 + $0x78] sm:$0xff]
        %v374 = vld [vmem:[%s2] sm:$0x1]
        %v376 = vlaneseq
        %v377 = vshrl.u32 %v376, 7
        %v378 = vsub.s32 0, %v377
        %v379 = vrot.slane %v374, %v378
        %381 = vmatprep.subr.mxu0 0.0
        %382 = vmatpush1.msra.mxu0 %v358
        %383 = vmatprep.subr.mxu0 0.0
        %384 = vmatpush1.msra.mxu0 %v359
        %385 = vmatprep.subr.mxu0 0.0
        %386 = vmatpush1.msra.mxu0 %v360
        %387 = vmatprep.subr.mxu0 0.0
        %388 = vmatpush1.msra.mxu0 %v361
        %389 = vmatprep.subr.mxu0 0.0
        %390 = vmatpush1.msra.mxu0 %v362
        %391 = vmatprep.subr.mxu0 0.0
        %392 = vmatpush1.msra.mxu0 %v363
        %393 = vmatprep.subr.mxu0 0.0
        %394 = vmatpush1.msra.mxu0 %v364
        %395 = vmatprep.subr.mxu0 0.0
        %396 = vmatpush1.msra.mxu0 %v365
        %397 = vmatprep.subr.mxu0 0.0
        %398 = vmatpush1.msra.mxu0 %v366
        %399 = vmatprep.subr.mxu0 0.0
        %400 = vmatpush1.msra.mxu0 %v367
        %401 = vmatprep.subr.mxu0 0.0
        %402 = vmatpush1.msra.mxu0 %v368
        %403 = vmatprep.subr.mxu0 0.0
        %404 = vmatpush1.msra.mxu0 %v369
        %405 = vmatprep.subr.mxu0 0.0
        %406 = vmatpush1.msra.mxu0 %v370
        %407 = vmatprep.subr.mxu0 0.0
        %408 = vmatpush1.msra.mxu0 %v371
        %409 = vmatprep.subr.mxu0 0.0
        %410 = vmatpush1.msra.mxu0 %v372
        %411 = vmatprep.subr.mxu0 0.0
        %412 = vmatpush1.msra.mxu0 %v373
        %413 = vmatprep.subr.mxu0 0.0
        %414 = vmatpush1.msra.mxu0 0.0
        %415 = vmatprep.subr.mxu0 0.0
        %416 = vmatpush1.msra.mxu0 0.0
        %417 = vmatprep.subr.mxu0 0.0
        %418 = vmatpush1.msra.mxu0 0.0
        %419 = vmatprep.subr.mxu0 0.0
        %420 = vmatpush1.msra.mxu0 0.0
        %421 = vmatprep.subr.mxu0 0.0
        %422 = vmatpush1.msra.mxu0 0.0
        %423 = vmatprep.subr.mxu0 0.0
        %424 = vmatpush1.msra.mxu0 0.0
        %425 = vmatprep.subr.mxu0 0.0
        %426 = vmatpush1.msra.mxu0 0.0
        %427 = vmatprep.subr.mxu0 0.0
        %428 = vmatpush1.msra.mxu0 0.0
        %429 = vmatprep.subr.mxu0 0.0
        %430 = vmatpush1.msra.mxu0 0.0
        %431 = vmatprep.subr.mxu0 0.0
        %432 = vmatpush1.msra.mxu0 0.0
        %433 = vmatprep.subr.mxu0 0.0
        %434 = vmatpush1.msra.mxu0 0.0
        %435 = vmatprep.subr.mxu0 0.0
        %436 = vmatpush1.msra.mxu0 0.0
        %437 = vmatprep.subr.mxu0 0.0
        %438 = vmatpush1.msra.mxu0 0.0
        %439 = vmatprep.subr.mxu0 0.0
        %440 = vmatpush1.msra.mxu0 0.0
        %441 = vmatprep.subr.mxu0 0.0
        %442 = vmatpush1.msra.mxu0 0.0
        %443 = vmatprep.subr.mxu0 0.0
        %444 = vmatpush1.msra.mxu0 0.0
        %445 = vmatprep.mubr.f32.mxu0 0.0
        %446 = vmatmul.mubr.f32.gmra.mrb[0].mxu0 %v351
        %v447 = vpop.f32.mrb[0].mxu0
        %v448 = vadd.f32 %v379, %v447
        %v449 = vpop.f32.mrb[0].mxu0
        %450 = vmatprep.mubr.f32.mxu0 0.0
        %451 = vmatmul.mubr.f32.gmra.mrb[0].mxu0 %v352
        %v452 = vpop.f32.mrb[0].mxu0
        %v453 = vadd.f32 %v379, %v452
        %v454 = vpop.f32.mrb[0].mxu0
        %455 = vmatprep.mubr.f32.mxu0 0.0
        %456 = vmatmul.mubr.f32.gmra.mrb[0].mxu0 %v353
        %v457 = vpop.f32.mrb[0].mxu0
        %v458 = vadd.f32 %v379, %v457
        %v459 = vpop.f32.mrb[0].mxu0
        %460 = vmatprep.mubr.f32.mxu0 0.0
        %461 = vmatmul.mubr.f32.gmra.mrb[0].mxu0 %v354
        %v462 = vpop.f32.mrb[0].mxu0
        %v463 = vadd.f32 %v379, %v462
        %v464 = vpop.f32.mrb[0].mxu0
        %465 = vmatprep.mubr.f32.mxu0 0.0
        %466 = vmatmul.mubr.f32.gmra.mrb[0].mxu0 %v355
        %v467 = vpop.f32.mrb[0].mxu0
        %v468 = vadd.f32 %v379, %v467
        %v469 = vpop.f32.mrb[0].mxu0
        %470 = vmatprep.mubr.f32.mxu0 0.0
        %471 = vmatmul.mubr.f32.gmra.mrb[0].mxu0 %v356
        %v472 = vpop.f32.mrb[0].mxu0
        %v473 = vadd.f32 %v379, %v472
        %v474 = vpop.f32.mrb[0].mxu0
        %475 = vmatprep.mubr.f32.mxu0 0.0
        %476 = vmatmul.mubr.f32.gmra.mrb[0].mxu0 %v357
        %v477 = vpop.f32.mrb[0].mxu0
        %v478 = vadd.f32 %v379, %v477
        %v479 = vpop.f32.mrb[0].mxu0
        %480 = vdwg.mxu0
        %v481 = vsub.f32 0.0, %v448
        %v482 = vsub.f32 0.0, %v453
        %v483 = vsub.f32 0.0, %v458
        %v484 = vsub.f32 0.0, %v463
        %v485 = vsub.f32 0.0, %v468
        %v486 = vsub.f32 0.0, %v473
        %v487 = vsub.f32 0.0, %v478
        %v488 = vmul.f32 %v481, 1.442695
        %v489 = vpow.pop %v488
        %v490 = vmul.f32 %v482, 1.442695
        %v491 = vpow.pop %v490
        %v492 = vmul.f32 %v483, 1.442695
        %v493 = vpow.pop %v492
        %v494 = vmul.f32 %v484, 1.442695
        %v495 = vpow.pop %v494
        %v496 = vmul.f32 %v485, 1.442695
        %v497 = vpow.pop %v496
        %v498 = vmul.f32 %v486, 1.442695
        %v499 = vpow.pop %v498
        %v500 = vmul.f32 %v487, 1.442695
        %v501 = vpow.pop %v500
        %v502 = vadd.f32 %v489, 1.0
        %v503 = vadd.f32 %v491, 1.0
        %v504 = vadd.f32 %v493, 1.0
        %v505 = vadd.f32 %v495, 1.0
        %v506 = vadd.f32 %v497, 1.0
        %v507 = vadd.f32 %v499, 1.0
        %v508 = vadd.f32 %v501, 1.0
        %v509 = vrcp.pop %v502
        %v510 = vrcp.pop %v503
        %v511 = vrcp.pop %v504
        %v512 = vrcp.pop %v505
        %v513 = vrcp.pop %v506
        %v514 = vrcp.pop %v507
        %v515 = vrcp.pop %v508
        %v516 = vld [vmem:[%s3] sm:$0xff]
        %v517 = vld [vmem:[%s3 + $0x8] sm:$0xff]
        %v518 = vld [vmem:[%s3 + $0x10] sm:$0xff]
        %v519 = vld [vmem:[%s3 + $0x18] sm:$0xff]
        %v520 = vld [vmem:[%s3 + $0x20] sm:$0xff]
        %v521 = vld [vmem:[%s3 + $0x28] sm:$0xff]
        %v522 = vld [vmem:[%s3 + $0x30] sm:$0xff]
        %v523 = vld [vmem:[%s3 + $0x38] sm:$0xff]
        %v524 = vld [vmem:[%s3 + $0x40] sm:$0xff]
        %v525 = vld [vmem:[%s3 + $0x48] sm:$0xff]
        %v526 = vld [vmem:[%s3 + $0x50] sm:$0xff]
        %v527 = vld [vmem:[%s3 + $0x58] sm:$0xff]
        %v528 = vld [vmem:[%s3 + $0x60] sm:$0xff]
        %v529 = vld [vmem:[%s3 + $0x68] sm:$0xff]
        %v530 = vld [vmem:[%s3 + $0x70] sm:$0xff]
        %v531 = vld [vmem:[%s3 + $0x78] sm:$0xff]
        %v532 = vld [vmem:[%s4] sm:$0x1]
        %v534 = vlaneseq
        %v535 = vshrl.u32 %v534, 7
        %v536 = vsub.s32 0, %v535
        %v537 = vrot.slane %v532, %v536
        %539 = vmatprep.subr.mxu0 0.0
        %540 = vmatpush1.msra.mxu0 %v516
        %541 = vmatprep.subr.mxu0 0.0
        %542 = vmatpush1.msra.mxu0 %v517
        %543 = vmatprep.subr.mxu0 0.0
        %544 = vmatpush1.msra.mxu0 %v518
        %545 = vmatprep.subr.mxu0 0.0
        %546 = vmatpush1.msra.mxu0 %v519
        %547 = vmatprep.subr.mxu0 0.0
        %548 = vmatpush1.msra.mxu0 %v520
        %549 = vmatprep.subr.mxu0 0.0
        %550 = vmatpush1.msra.mxu0 %v521
        %551 = vmatprep.subr.mxu0 0.0
        %552 = vmatpush1.msra.mxu0 %v522
        %553 = vmatprep.subr.mxu0 0.0
        %554 = vmatpush1.msra.mxu0 %v523
        %555 = vmatprep.subr.mxu0 0.0
        %556 = vmatpush1.msra.mxu0 %v524
        %557 = vmatprep.subr.mxu0 0.0
        %558 = vmatpush1.msra.mxu0 %v525
        %559 = vmatprep.subr.mxu0 0.0
        %560 = vmatpush1.msra.mxu0 %v526
        %561 = vmatprep.subr.mxu0 0.0
        %562 = vmatpush1.msra.mxu0 %v527
        %563 = vmatprep.subr.mxu0 0.0
        %564 = vmatpush1.msra.mxu0 %v528
        %565 = vmatprep.subr.mxu0 0.0
        %566 = vmatpush1.msra.mxu0 %v529
        %567 = vmatprep.subr.mxu0 0.0
        %568 = vmatpush1.msra.mxu0 %v530
        %569 = vmatprep.subr.mxu0 0.0
        %570 = vmatpush1.msra.mxu0 %v531
        %571 = vmatprep.subr.mxu0 0.0
        %572 = vmatpush1.msra.mxu0 0.0
        %573 = vmatprep.subr.mxu0 0.0
        %574 = vmatpush1.msra.mxu0 0.0
        %575 = vmatprep.subr.mxu0 0.0
        %576 = vmatpush1.msra.mxu0 0.0
        %577 = vmatprep.subr.mxu0 0.0
        %578 = vmatpush1.msra.mxu0 0.0
        %579 = vmatprep.subr.mxu0 0.0
        %580 = vmatpush1.msra.mxu0 0.0
        %581 = vmatprep.subr.mxu0 0.0
        %582 = vmatpush1.msra.mxu0 0.0
        %583 = vmatprep.subr.mxu0 0.0
        %584 = vmatpush1.msra.mxu0 0.0
        %585 = vmatprep.subr.mxu0 0.0
        %586 = vmatpush1.msra.mxu0 0.0
        %587 = vmatprep.subr.mxu0 0.0
        %588 = vmatpush1.msra.mxu0 0.0
        %589 = vmatprep.subr.mxu0 0.0
        %590 = vmatpush1.msra.mxu0 0.0
        %591 = vmatprep.subr.mxu0 0.0
        %592 = vmatpush1.msra.mxu0 0.0
        %593 = vmatprep.subr.mxu0 0.0
        %594 = vmatpush1.msra.mxu0 0.0
        %595 = vmatprep.subr.mxu0 0.0
        %596 = vmatpush1.msra.mxu0 0.0
        %597 = vmatprep.subr.mxu0 0.0
        %598 = vmatpush1.msra.mxu0 0.0
        %599 = vmatprep.subr.mxu0 0.0
        %600 = vmatpush1.msra.mxu0 0.0
        %601 = vmatprep.subr.mxu0 0.0
        %602 = vmatpush1.msra.mxu0 0.0
        %603 = vmatprep.mubr.f32.mxu0 0.0
        %604 = vmatmul.mubr.f32.gmra.mrb[0].mxu0 %v509
        %v605 = vpop.f32.mrb[0].mxu0
        %v606 = vadd.f32 %v537, %v605
        %v607 = vpop.f32.mrb[0].mxu0
        %608 = vmatprep.mubr.f32.mxu0 0.0
        %609 = vmatmul.mubr.f32.gmra.mrb[0].mxu0 %v510
        %v610 = vpop.f32.mrb[0].mxu0
        %v611 = vadd.f32 %v537, %v610
        %v612 = vpop.f32.mrb[0].mxu0
        %613 = vmatprep.mubr.f32.mxu0 0.0
        %614 = vmatmul.mubr.f32.gmra.mrb[0].mxu0 %v511
        %v615 = vpop.f32.mrb[0].mxu0
        %v616 = vadd.f32 %v537, %v615
        %v617 = vpop.f32.mrb[0].mxu0
        %618 = vmatprep.mubr.f32.mxu0 0.0
        %619 = vmatmul.mubr.f32.gmra.mrb[0].mxu0 %v512
        %v620 = vpop.f32.mrb[0].mxu0
        %v621 = vadd.f32 %v537, %v620
        %v622 = vpop.f32.mrb[0].mxu0
        %623 = vmatprep.mubr.f32.mxu0 0.0
        %624 = vmatmul.mubr.f32.gmra.mrb[0].mxu0 %v513
        %v625 = vpop.f32.mrb[0].mxu0
        %v626 = vadd.f32 %v537, %v625
        %v627 = vpop.f32.mrb[0].mxu0
        %628 = vmatprep.mubr.f32.mxu0 0.0
        %629 = vmatmul.mubr.f32.gmra.mrb[0].mxu0 %v514
        %v630 = vpop.f32.mrb[0].mxu0
        %v631 = vadd.f32 %v537, %v630
        %v632 = vpop.f32.mrb[0].mxu0
        %633 = vmatprep.mubr.f32.mxu0 0.0
        %634 = vmatmul.mubr.f32.gmra.mrb[0].mxu0 %v515
        %v635 = vpop.f32.mrb[0].mxu0
        %v636 = vadd.f32 %v537, %v635
        %v637 = vpop.f32.mrb[0].mxu0
        %638 = vdwg.mxu0
        %v639 = vsub.f32 0.0, %v606
        %v640 = vsub.f32 0.0, %v611
        %v641 = vsub.f32 0.0, %v616
        %v642 = vsub.f32 0.0, %v621
        %v643 = vsub.f32 0.0, %v626
        %v644 = vsub.f32 0.0, %v631
        %v645 = vsub.f32 0.0, %v636
        %v646 = vmul.f32 %v639, 1.442695
        %v647 = vpow.pop %v646
        %v648 = vmul.f32 %v640, 1.442695
        %v649 = vpow.pop %v648
        %v650 = vmul.f32 %v641, 1.442695
        %v651 = vpow.pop %v650
        %v652 = vmul.f32 %v642, 1.442695
        %v653 = vpow.pop %v652
        %v654 = vmul.f32 %v643, 1.442695
        %v655 = vpow.pop %v654
        %v656 = vmul.f32 %v644, 1.442695
        %v657 = vpow.pop %v656
        %v658 = vmul.f32 %v645, 1.442695
        %v659 = vpow.pop %v658
        %v660 = vadd.f32 %v647, 1.0
        %v661 = vadd.f32 %v649, 1.0
        %v662 = vadd.f32 %v651, 1.0
        %v663 = vadd.f32 %v653, 1.0
        %v664 = vadd.f32 %v655, 1.0
        %v665 = vadd.f32 %v657, 1.0
        %v666 = vadd.f32 %v659, 1.0
        %v667 = vrcp.pop %v660
        %v668 = vrcp.pop %v661
        %v669 = vrcp.pop %v662
        %v670 = vrcp.pop %v663
        %v671 = vrcp.pop %v664
        %v672 = vrcp.pop %v665
        %v673 = vrcp.pop %v666
        %v674 = vld [vmem:[%s5] sm:$0xff]
        %v675 = vld [vmem:[%s5 + $0x8] sm:$0xff]
        %v676 = vld [vmem:[%s5 + $0x10] sm:$0xff]
        %v677 = vld [vmem:[%s5 + $0x18] sm:$0xff]
        %v678 = vld [vmem:[%s5 + $0x20] sm:$0xff]
        %v679 = vld [vmem:[%s5 + $0x28] sm:$0xff]
        %v680 = vld [vmem:[%s5 + $0x30] sm:$0xff]
        %v681 = vld [vmem:[%s5 + $0x38] sm:$0xff]
        %v682 = vld [vmem:[%s5 + $0x40] sm:$0xff]
        %v683 = vld [vmem:[%s5 + $0x48] sm:$0xff]
        %v684 = vld [vmem:[%s5 + $0x50] sm:$0xff]
        %v685 = vld [vmem:[%s5 + $0x58] sm:$0xff]
        %v686 = vld [vmem:[%s5 + $0x60] sm:$0xff]
        %v687 = vld [vmem:[%s5 + $0x68] sm:$0xff]
        %v688 = vld [vmem:[%s5 + $0x70] sm:$0xff]
        %v689 = vld [vmem:[%s5 + $0x78] sm:$0xff]
        %v690 = vld [vmem:[%s6] sm:$0x1]
        %v692 = vlaneseq
        %v693 = vshrl.u32 %v692, 7
        %v694 = vsub.s32 0, %v693
        %v695 = vrot.slane %v690, %v694
        %697 = vmatprep.subr.mxu0 0.0
        %698 = vmatpush1.msra.mxu0 %v674
        %699 = vmatprep.subr.mxu0 0.0
        %700 = vmatpush1.msra.mxu0 %v675
        %701 = vmatprep.subr.mxu0 0.0
        %702 = vmatpush1.msra.mxu0 %v676
        %703 = vmatprep.subr.mxu0 0.0
        %704 = vmatpush1.msra.mxu0 %v677
        %705 = vmatprep.subr.mxu0 0.0
        %706 = vmatpush1.msra.mxu0 %v678
        %707 = vmatprep.subr.mxu0 0.0
        %708 = vmatpush1.msra.mxu0 %v679
        %709 = vmatprep.subr.mxu0 0.0
        %710 = vmatpush1.msra.mxu0 %v680
        %711 = vmatprep.subr.mxu0 0.0
        %712 = vmatpush1.msra.mxu0 %v681
        %713 = vmatprep.subr.mxu0 0.0
        %714 = vmatpush1.msra.mxu0 %v682
        %715 = vmatprep.subr.mxu0 0.0
        %716 = vmatpush1.msra.mxu0 %v683
        %717 = vmatprep.subr.mxu0 0.0
        %718 = vmatpush1.msra.mxu0 %v684
        %719 = vmatprep.subr.mxu0 0.0
        %720 = vmatpush1.msra.mxu0 %v685
        %721 = vmatprep.subr.mxu0 0.0
        %722 = vmatpush1.msra.mxu0 %v686
        %723 = vmatprep.subr.mxu0 0.0
        %724 = vmatpush1.msra.mxu0 %v687
        %725 = vmatprep.subr.mxu0 0.0
        %726 = vmatpush1.msra.mxu0 %v688
        %727 = vmatprep.subr.mxu0 0.0
        %728 = vmatpush1.msra.mxu0 %v689
        %729 = vmatprep.subr.mxu0 0.0
        %730 = vmatpush1.msra.mxu0 0.0
        %731 = vmatprep.subr.mxu0 0.0
        %732 = vmatpush1.msra.mxu0 0.0
        %733 = vmatprep.subr.mxu0 0.0
        %734 = vmatpush1.msra.mxu0 0.0
        %735 = vmatprep.subr.mxu0 0.0
        %736 = vmatpush1.msra.mxu0 0.0
        %737 = vmatprep.subr.mxu0 0.0
        %738 = vmatpush1.msra.mxu0 0.0
        %739 = vmatprep.subr.mxu0 0.0
        %740 = vmatpush1.msra.mxu0 0.0
        %741 = vmatprep.subr.mxu0 0.0
        %742 = vmatpush1.msra.mxu0 0.0
        %743 = vmatprep.subr.mxu0 0.0
        %744 = vmatpush1.msra.mxu0 0.0
        %745 = vmatprep.subr.mxu0 0.0
        %746 = vmatpush1.msra.mxu0 0.0
        %747 = vmatprep.subr.mxu0 0.0
        %748 = vmatpush1.msra.mxu0 0.0
        %749 = vmatprep.subr.mxu0 0.0
        %750 = vmatpush1.msra.mxu0 0.0
        %751 = vmatprep.subr.mxu0 0.0
        %752 = vmatpush1.msra.mxu0 0.0
        %753 = vmatprep.subr.mxu0 0.0
        %754 = vmatpush1.msra.mxu0 0.0
        %755 = vmatprep.subr.mxu0 0.0
        %756 = vmatpush1.msra.mxu0 0.0
        %757 = vmatprep.subr.mxu0 0.0
        %758 = vmatpush1.msra.mxu0 0.0
        %759 = vmatprep.subr.mxu0 0.0
        %760 = vmatpush1.msra.mxu0 0.0
        %761 = vmatprep.mubr.f32.mxu0 0.0
        %762 = vmatmul.mubr.f32.gmra.mrb[0].mxu0 %v667
        %v763 = vpop.f32.mrb[0].mxu0
        %v764 = vadd.f32 %v695, %v763
        %v765 = vpop.f32.mrb[0].mxu0
        %766 = vmatprep.mubr.f32.mxu0 0.0
        %767 = vmatmul.mubr.f32.gmra.mrb[0].mxu0 %v668
        %v768 = vpop.f32.mrb[0].mxu0
        %v769 = vadd.f32 %v695, %v768
        %v770 = vpop.f32.mrb[0].mxu0
        %771 = vmatprep.mubr.f32.mxu0 0.0
        %772 = vmatmul.mubr.f32.gmra.mrb[0].mxu0 %v669
        %v773 = vpop.f32.mrb[0].mxu0
        %v774 = vadd.f32 %v695, %v773
        %v775 = vpop.f32.mrb[0].mxu0
        %776 = vmatprep.mubr.f32.mxu0 0.0
        %777 = vmatmul.mubr.f32.gmra.mrb[0].mxu0 %v670
        %v778 = vpop.f32.mrb[0].mxu0
        %v779 = vadd.f32 %v695, %v778
        %v780 = vpop.f32.mrb[0].mxu0
        %781 = vmatprep.mubr.f32.mxu0 0.0
        %782 = vmatmul.mubr.f32.gmra.mrb[0].mxu0 %v671
        %v783 = vpop.f32.mrb[0].mxu0
        %v784 = vadd.f32 %v695, %v783
        %v785 = vpop.f32.mrb[0].mxu0
        %786 = vmatprep.mubr.f32.mxu0 0.0
        %787 = vmatmul.mubr.f32.gmra.mrb[0].mxu0 %v672
        %v788 = vpop.f32.mrb[0].mxu0
        %v789 = vadd.f32 %v695, %v788
        %v790 = vpop.f32.mrb[0].mxu0
        %791 = vmatprep.mubr.f32.mxu0 0.0
        %792 = vmatmul.mubr.f32.gmra.mrb[0].mxu0 %v673
        %v793 = vpop.f32.mrb[0].mxu0
        %v794 = vadd.f32 %v695, %v793
        %v795 = vpop.f32.mrb[0].mxu0
        %796 = vdwg.mxu0
        %v797 = vsub.f32 0.0, %v764
        %v798 = vsub.f32 0.0, %v769
        %v799 = vsub.f32 0.0, %v774
        %v800 = vsub.f32 0.0, %v779
        %v801 = vsub.f32 0.0, %v784
        %v802 = vsub.f32 0.0, %v789
        %v803 = vsub.f32 0.0, %v794
        %v804 = vmul.f32 %v797, 1.442695
        %v805 = vpow.pop %v804
        %v806 = vmul.f32 %v798, 1.442695
        %v807 = vpow.pop %v806
        %v808 = vmul.f32 %v799, 1.442695
        %v809 = vpow.pop %v808
        %v810 = vmul.f32 %v800, 1.442695
        %v811 = vpow.pop %v810
        %v812 = vmul.f32 %v801, 1.442695
        %v813 = vpow.pop %v812
        %v814 = vmul.f32 %v802, 1.442695
        %v815 = vpow.pop %v814
        %v816 = vmul.f32 %v803, 1.442695
        %v817 = vpow.pop %v816
        %v818 = vadd.f32 %v805, 1.0
        %v819 = vadd.f32 %v807, 1.0
        %v820 = vadd.f32 %v809, 1.0
        %v821 = vadd.f32 %v811, 1.0
        %v822 = vadd.f32 %v813, 1.0
        %v823 = vadd.f32 %v815, 1.0
        %v824 = vadd.f32 %v817, 1.0
        %v825 = vrcp.pop %v818
        %v826 = vrcp.pop %v819
        %v827 = vrcp.pop %v820
        %v828 = vrcp.pop %v821
        %v829 = vrcp.pop %v822
        %v830 = vrcp.pop %v823
        %v831 = vrcp.pop %v824
        %v832 = vld [vmem:[#allocation2] sm:$0xff]
        %v833 = vld [vmem:[#allocation2 + $0x8] sm:$0xff]
        %v834 = vld [vmem:[#allocation2 + $0x10] sm:$0xff]
        %v835 = vld [vmem:[#allocation2 + $0x18] sm:$0xff]
        %v836 = vld [vmem:[#allocation2 + $0x20] sm:$0xff]
        %v837 = vld [vmem:[#allocation2 + $0x28] sm:$0xff]
        %v838 = vld [vmem:[#allocation2 + $0x30] sm:$0xff]
        %v839 = vld [vmem:[#allocation2 + $0x38] sm:$0xff]
        %v840 = vld [vmem:[#allocation2 + $0x40] sm:$0xff]
        %v841 = vld [vmem:[#allocation2 + $0x48] sm:$0xff]
        %v842 = vld [vmem:[#allocation2 + $0x50] sm:$0xff]
        %v843 = vld [vmem:[#allocation2 + $0x58] sm:$0xff]
        %v844 = vld [vmem:[#allocation2 + $0x60] sm:$0xff]
        %v845 = vld [vmem:[#allocation2 + $0x68] sm:$0xff]
        %v846 = vld [vmem:[#allocation2 + $0x70] sm:$0xff]
        %v847 = vld [vmem:[#allocation2 + $0x78] sm:$0xff]
        %v848 = vld [vmem:[%s8] sm:$0x1]
        %v850 = vlaneseq
        %v851 = vshrl.u32 %v850, 7
        %v852 = vsub.s32 0, %v851
        %v853 = vrot.slane %v848, %v852
        %855 = vmatprep.subr.mxu0 0.0
        %856 = vmatpush1.msra.mxu0 %v832
        %857 = vmatprep.subr.mxu0 0.0
        %858 = vmatpush1.msra.mxu0 %v833
        %859 = vmatprep.subr.mxu0 0.0
        %860 = vmatpush1.msra.mxu0 %v834
        %861 = vmatprep.subr.mxu0 0.0
        %862 = vmatpush1.msra.mxu0 %v835
        %863 = vmatprep.subr.mxu0 0.0
        %864 = vmatpush1.msra.mxu0 %v836
        %865 = vmatprep.subr.mxu0 0.0
        %866 = vmatpush1.msra.mxu0 %v837
        %867 = vmatprep.subr.mxu0 0.0
        %868 = vmatpush1.msra.mxu0 %v838
        %869 = vmatprep.subr.mxu0 0.0
        %870 = vmatpush1.msra.mxu0 %v839
        %871 = vmatprep.subr.mxu0 0.0
        %872 = vmatpush1.msra.mxu0 %v840
        %873 = vmatprep.subr.mxu0 0.0
        %874 = vmatpush1.msra.mxu0 %v841
        %875 = vmatprep.subr.mxu0 0.0
        %876 = vmatpush1.msra.mxu0 %v842
        %877 = vmatprep.subr.mxu0 0.0
        %878 = vmatpush1.msra.mxu0 %v843
        %879 = vmatprep.subr.mxu0 0.0
        %880 = vmatpush1.msra.mxu0 %v844
        %881 = vmatprep.subr.mxu0 0.0
        %882 = vmatpush1.msra.mxu0 %v845
        %883 = vmatprep.subr.mxu0 0.0
        %884 = vmatpush1.msra.mxu0 %v846
        %885 = vmatprep.subr.mxu0 0.0
        %886 = vmatpush1.msra.mxu0 %v847
        %887 = vmatprep.subr.mxu0 0.0
        %888 = vmatpush1.msra.mxu0 0.0
        %889 = vmatprep.subr.mxu0 0.0
        %890 = vmatpush1.msra.mxu0 0.0
        %891 = vmatprep.subr.mxu0 0.0
        %892 = vmatpush1.msra.mxu0 0.0
        %893 = vmatprep.subr.mxu0 0.0
        %894 = vmatpush1.msra.mxu0 0.0
        %895 = vmatprep.subr.mxu0 0.0
        %896 = vmatpush1.msra.mxu0 0.0
        %897 = vmatprep.subr.mxu0 0.0
        %898 = vmatpush1.msra.mxu0 0.0
        %899 = vmatprep.subr.mxu0 0.0
        %900 = vmatpush1.msra.mxu0 0.0
        %901 = vmatprep.subr.mxu0 0.0
        %902 = vmatpush1.msra.mxu0 0.0
        %903 = vmatprep.subr.mxu0 0.0
        %904 = vmatpush1.msra.mxu0 0.0
        %905 = vmatprep.subr.mxu0 0.0
        %906 = vmatpush1.msra.mxu0 0.0
        %907 = vmatprep.subr.mxu0 0.0
        %908 = vmatpush1.msra.mxu0 0.0
        %909 = vmatprep.subr.mxu0 0.0
        %910 = vmatpush1.msra.mxu0 0.0
        %911 = vmatprep.subr.mxu0 0.0
        %912 = vmatpush1.msra.mxu0 0.0
        %913 = vmatprep.subr.mxu0 0.0
        %914 = vmatpush1.msra.mxu0 0.0
        %915 = vmatprep.subr.mxu0 0.0
        %916 = vmatpush1.msra.mxu0 0.0
        %917 = vmatprep.subr.mxu0 0.0
        %918 = vmatpush1.msra.mxu0 0.0
        %919 = vmatprep.mubr.f32.mxu0 0.0
        %920 = vmatmul.mubr.f32.gmra.mrb[0].mxu0 %v825
        %v921 = vpop.f32.mrb[0].mxu0
        %v922 = vadd.f32 %v853, %v921
        %v923 = vpop.f32.mrb[0].mxu0
        %924 = vmatprep.mubr.f32.mxu0 0.0
        %925 = vmatmul.mubr.f32.gmra.mrb[0].mxu0 %v826
        %v926 = vpop.f32.mrb[0].mxu0
        %v927 = vadd.f32 %v853, %v926
        %v928 = vpop.f32.mrb[0].mxu0
        %929 = vmatprep.mubr.f32.mxu0 0.0
        %930 = vmatmul.mubr.f32.gmra.mrb[0].mxu0 %v827
        %v931 = vpop.f32.mrb[0].mxu0
        %v932 = vadd.f32 %v853, %v931
        %v933 = vpop.f32.mrb[0].mxu0
        %934 = vmatprep.mubr.f32.mxu0 0.0
        %935 = vmatmul.mubr.f32.gmra.mrb[0].mxu0 %v828
        %v936 = vpop.f32.mrb[0].mxu0
        %v937 = vadd.f32 %v853, %v936
        %v938 = vpop.f32.mrb[0].mxu0
        %939 = vmatprep.mubr.f32.mxu0 0.0
        %940 = vmatmul.mubr.f32.gmra.mrb[0].mxu0 %v829
        %v941 = vpop.f32.mrb[0].mxu0
        %v942 = vadd.f32 %v853, %v941
        %v943 = vpop.f32.mrb[0].mxu0
        %944 = vmatprep.mubr.f32.mxu0 0.0
        %945 = vmatmul.mubr.f32.gmra.mrb[0].mxu0 %v830
        %v946 = vpop.f32.mrb[0].mxu0
        %v947 = vadd.f32 %v853, %v946
        %v948 = vpop.f32.mrb[0].mxu0
        %949 = vmatprep.mubr.f32.mxu0 0.0
        %950 = vmatmul.mubr.f32.gmra.mrb[0].mxu0 %v831
        %v951 = vpop.f32.mrb[0].mxu0
        %v952 = vadd.f32 %v853, %v951
        %v953 = vpop.f32.mrb[0].mxu0
        %954 = vdwg.mxu0
        %955 = vst [vmem:[%s349] sm:$0xff] %v922
        %956 = vst [vmem:[%s349 + $0x8] sm:$0xff] %v927
        %957 = vst [vmem:[%s349 + $0x10] sm:$0xff] %v932
        %958 = vst [vmem:[%s349 + $0x18] sm:$0xff] %v937
        %959 = vst [vmem:[%s349 + $0x20] sm:$0xff] %v942
        %960 = vst [vmem:[%s349 + $0x28] sm:$0xff] %v947
        %961 = vst [vmem:[%s349 + $0x30] sm:$0xff] %v952
        %v962 = vld [vmem:[%s343 + $0x38] sm:$0xff]
        %v963 = vld [vmem:[%s343 + $0x40] sm:$0xff]
        %v964 = vld [vmem:[%s343 + $0x48] sm:$0xff]
        %v965 = vld [vmem:[%s343 + $0x50] sm:$0xff]
        %v966 = vld [vmem:[%s343 + $0x58] sm:$0xff]
        %v967 = vld [vmem:[%s343 + $0x60] sm:$0xff]
        %v968 = vld [vmem:[%s343 + $0x68] sm:$0xff]
        %v969 = vld [vmem:[%s1] sm:$0xff]
        %v970 = vld [vmem:[%s1 + $0x8] sm:$0xff]
        %v971 = vld [vmem:[%s1 + $0x10] sm:$0xff]
        %v972 = vld [vmem:[%s1 + $0x18] sm:$0xff]
        %v973 = vld [vmem:[%s1 + $0x20] sm:$0xff]
        %v974 = vld [vmem:[%s1 + $0x28] sm:$0xff]
        %v975 = vld [vmem:[%s1 + $0x30] sm:$0xff]
        %v976 = vld [vmem:[%s1 + $0x38] sm:$0xff]
        %v977 = vld [vmem:[%s1 + $0x40] sm:$0xff]
        %v978 = vld [vmem:[%s1 + $0x48] sm:$0xff]
        %v979 = vld [vmem:[%s1 + $0x50] sm:$0xff]
        %v980 = vld [vmem:[%s1 + $0x58] sm:$0xff]
        %v981 = vld [vmem:[%s1 + $0x60] sm:$0xff]
        %v982 = vld [vmem:[%s1 + $0x68] sm:$0xff]
        %v983 = vld [vmem:[%s1 + $0x70] sm:$0xff]
        %v984 = vld [vmem:[%s1 + $0x78] sm:$0xff]
        %v985 = vld [vmem:[%s2] sm:$0x1]
        %v987 = vlaneseq
        %v988 = vshrl.u32 %v987, 7
        %v989 = vsub.s32 0, %v988
        %v990 = vrot.slane %v985, %v989
        %992 = vmatprep.subr.mxu0 0.0
        %993 = vmatpush1.msra.mxu0 %v969
        %994 = vmatprep.subr.mxu0 0.0
        %995 = vmatpush1.msra.mxu0 %v970
        %996 = vmatprep.subr.mxu0 0.0
        %997 = vmatpush1.msra.mxu0 %v971
        %998 = vmatprep.subr.mxu0 0.0
        %999 = vmatpush1.msra.mxu0 %v972
        %1000 = vmatprep.subr.mxu0 0.0
        %1001 = vmatpush1.msra.mxu0 %v973
        %1002 = vmatprep.subr.mxu0 0.0
        %1003 = vmatpush1.msra.mxu0 %v974
        %1004 = vmatprep.subr.mxu0 0.0
        %1005 = vmatpush1.msra.mxu0 %v975
        %1006 = vmatprep.subr.mxu0 0.0
        %1007 = vmatpush1.msra.mxu0 %v976
        %1008 = vmatprep.subr.mxu0 0.0
        %1009 = vmatpush1.msra.mxu0 %v977
        %1010 = vmatprep.subr.mxu0 0.0
        %1011 = vmatpush1.msra.mxu0 %v978
        %1012 = vmatprep.subr.mxu0 0.0
        %1013 = vmatpush1.msra.mxu0 %v979
        %1014 = vmatprep.subr.mxu0 0.0
        %1015 = vmatpush1.msra.mxu0 %v980
        %1016 = vmatprep.subr.mxu0 0.0
        %1017 = vmatpush1.msra.mxu0 %v981
        %1018 = vmatprep.subr.mxu0 0.0
        %1019 = vmatpush1.msra.mxu0 %v982
        %1020 = vmatprep.subr.mxu0 0.0
        %1021 = vmatpush1.msra.mxu0 %v983
        %1022 = vmatprep.subr.mxu0 0.0
        %1023 = vmatpush1.msra.mxu0 %v984
        %1024 = vmatprep.subr.mxu0 0.0
        %1025 = vmatpush1.msra.mxu0 0.0
        %1026 = vmatprep.subr.mxu0 0.0
        %1027 = vmatpush1.msra.mxu0 0.0
        %1028 = vmatprep.subr.mxu0 0.0
        %1029 = vmatpush1.msra.mxu0 0.0
        %1030 = vmatprep.subr.mxu0 0.0
        %1031 = vmatpush1.msra.mxu0 0.0
        %1032 = vmatprep.subr.mxu0 0.0
        %1033 = vmatpush1.msra.mxu0 0.0
        %1034 = vmatprep.subr.mxu0 0.0
        %1035 = vmatpush1.msra.mxu0 0.0
        %1036 = vmatprep.subr.mxu0 0.0
        %1037 = vmatpush1.msra.mxu0 0.0
        %1038 = vmatprep.subr.mxu0 0.0
        %1039 = vmatpush1.msra.mxu0 0.0
        %1040 = vmatprep.subr.mxu0 0.0
        %1041 = vmatpush1.msra.mxu0 0.0
        %1042 = vmatprep.subr.mxu0 0.0
        %1043 = vmatpush1.msra.mxu0 0.0
        %1044 = vmatprep.subr.mxu0 0.0
        %1045 = vmatpush1.msra.mxu0 0.0
        %1046 = vmatprep.subr.mxu0 0.0
        %1047 = vmatpush1.msra.mxu0 0.0
        %1048 = vmatprep.subr.mxu0 0.0
        %1049 = vmatpush1.msra.mxu0 0.0
        %1050 = vmatprep.subr.mxu0 0.0
        %1051 = vmatpush1.msra.mxu0 0.0
        %1052 = vmatprep.subr.mxu0 0.0
        %1053 = vmatpush1.msra.mxu0 0.0
        %1054 = vmatprep.subr.mxu0 0.0
        %1055 = vmatpush1.msra.mxu0 0.0
        %1056 = vmatprep.mubr.f32.mxu0 0.0
        %1057 = vmatmul.mubr.f32.gmra.mrb[0].mxu0 %v962
        %v1058 = vpop.f32.mrb[0].mxu0
        %v1059 = vadd.f32 %v990, %v1058
        %v1060 = vpop.f32.mrb[0].mxu0
        %1061 = vmatprep.mubr.f32.mxu0 0.0
        %1062 = vmatmul.mubr.f32.gmra.mrb[0].mxu0 %v963
        %v1063 = vpop.f32.mrb[0].mxu0
        %v1064 = vadd.f32 %v990, %v1063
        %v1065 = vpop.f32.mrb[0].mxu0
        %1066 = vmatprep.mubr.f32.mxu0 0.0
        %1067 = vmatmul.mubr.f32.gmra.mrb[0].mxu0 %v964
        %v1068 = vpop.f32.mrb[0].mxu0
        %v1069 = vadd.f32 %v990, %v1068
        %v1070 = vpop.f32.mrb[0].mxu0
        %1071 = vmatprep.mubr.f32.mxu0 0.0
        %1072 = vmatmul.mubr.f32.gmra.mrb[0].mxu0 %v965
        %v1073 = vpop.f32.mrb[0].mxu0
        %v1074 = vadd.f32 %v990, %v1073
        %v1075 = vpop.f32.mrb[0].mxu0
        %1076 = vmatprep.mubr.f32.mxu0 0.0
        %1077 = vmatmul.mubr.f32.gmra.mrb[0].mxu0 %v966
        %v1078 = vpop.f32.mrb[0].mxu0
        %v1079 = vadd.f32 %v990, %v1078
        %v1080 = vpop.f32.mrb[0].mxu0
        %1081 = vmatprep.mubr.f32.mxu0 0.0
        %1082 = vmatmul.mubr.f32.gmra.mrb[0].mxu0 %v967
        %v1083 = vpop.f32.mrb[0].mxu0
        %v1084 = vadd.f32 %v990, %v1083
        %v1085 = vpop.f32.mrb[0].mxu0
        %1086 = vmatprep.mubr.f32.mxu0 0.0
        %1087 = vmatmul.mubr.f32.gmra.mrb[0].mxu0 %v968
        %v1088 = vpop.f32.mrb[0].mxu0
        %v1089 = vadd.f32 %v990, %v1088
        %v1090 = vpop.f32.mrb[0].mxu0
        %1091 = vdwg.mxu0
        %v1092 = vsub.f32 0.0, %v1059
        %v1093 = vsub.f32 0.0, %v1064
        %v1094 = vsub.f32 0.0, %v1069
        %v1095 = vsub.f32 0.0, %v1074
        %v1096 = vsub.f32 0.0, %v1079
        %v1097 = vsub.f32 0.0, %v1084
        %v1098 = vsub.f32 0.0, %v1089
        %v1099 = vmul.f32 %v1092, 1.442695
        %v1100 = vpow.pop %v1099
        %v1101 = vmul.f32 %v1093, 1.442695
        %v1102 = vpow.pop %v1101
        %v1103 = vmul.f32 %v1094, 1.442695
        %v1104 = vpow.pop %v1103
        %v1105 = vmul.f32 %v1095, 1.442695
        %v1106 = vpow.pop %v1105
        %v1107 = vmul.f32 %v1096, 1.442695
        %v1108 = vpow.pop %v1107
        %v1109 = vmul.f32 %v1097, 1.442695
        %v1110 = vpow.pop %v1109
        %v1111 = vmul.f32 %v1098, 1.442695
        %v1112 = vpow.pop %v1111
        %v1113 = vadd.f32 %v1100, 1.0
        %v1114 = vadd.f32 %v1102, 1.0
        %v1115 = vadd.f32 %v1104, 1.0
        %v1116 = vadd.f32 %v1106, 1.0
        %v1117 = vadd.f32 %v1108, 1.0
        %v1118 = vadd.f32 %v1110, 1.0
        %v1119 = vadd.f32 %v1112, 1.0
        %v1120 = vrcp.pop %v1113
        %v1121 = vrcp.pop %v1114
        %v1122 = vrcp.pop %v1115
        %v1123 = vrcp.pop %v1116
        %v1124 = vrcp.pop %v1117
        %v1125 = vrcp.pop %v1118
        %v1126 = vrcp.pop %v1119
        %v1127 = vld [vmem:[%s3] sm:$0xff]
        %v1128 = vld [vmem:[%s3 + $0x8] sm:$0xff]
        %v1129 = vld [vmem:[%s3 + $0x10] sm:$0xff]
        %v1130 = vld [vmem:[%s3 + $0x18] sm:$0xff]
        %v1131 = vld [vmem:[%s3 + $0x20] sm:$0xff]
        %v1132 = vld [vmem:[%s3 + $0x28] sm:$0xff]
        %v1133 = vld [vmem:[%s3 + $0x30] sm:$0xff]
        %v1134 = vld [vmem:[%s3 + $0x38] sm:$0xff]
        %v1135 = vld [vmem:[%s3 + $0x40] sm:$0xff]
        %v1136 = vld [vmem:[%s3 + $0x48] sm:$0xff]
        %v1137 = vld [vmem:[%s3 + $0x50] sm:$0xff]
        %v1138 = vld [vmem:[%s3 + $0x58] sm:$0xff]
        %v1139 = vld [vmem:[%s3 + $0x60] sm:$0xff]
        %v1140 = vld [vmem:[%s3 + $0x68] sm:$0xff]
        %v1141 = vld [vmem:[%s3 + $0x70] sm:$0xff]
        %v1142 = vld [vmem:[%s3 + $0x78] sm:$0xff]
        %v1143 = vld [vmem:[%s4] sm:$0x1]
        %v1145 = vlaneseq
        %v1146 = vshrl.u32 %v1145, 7
        %v1147 = vsub.s32 0, %v1146
        %v1148 = vrot.slane %v1143, %v1147
        %1150 = vmatprep.subr.mxu0 0.0
        %1151 = vmatpush1.msra.mxu0 %v1127
        %1152 = vmatprep.subr.mxu0 0.0
        %1153 = vmatpush1.msra.mxu0 %v1128
        %1154 = vmatprep.subr.mxu0 0.0
        %1155 = vmatpush1.msra.mxu0 %v1129
        %1156 = vmatprep.subr.mxu0 0.0
        %1157 = vmatpush1.msra.mxu0 %v1130
        %1158 = vmatprep.subr.mxu0 0.0
        %1159 = vmatpush1.msra.mxu0 %v1131
        %1160 = vmatprep.subr.mxu0 0.0
        %1161 = vmatpush1.msra.mxu0 %v1132
        %1162 = vmatprep.subr.mxu0 0.0
        %1163 = vmatpush1.msra.mxu0 %v1133
        %1164 = vmatprep.subr.mxu0 0.0
        %1165 = vmatpush1.msra.mxu0 %v1134
        %1166 = vmatprep.subr.mxu0 0.0
        %1167 = vmatpush1.msra.mxu0 %v1135
        %1168 = vmatprep.subr.mxu0 0.0
        %1169 = vmatpush1.msra.mxu0 %v1136
        %1170 = vmatprep.subr.mxu0 0.0
        %1171 = vmatpush1.msra.mxu0 %v1137
        %1172 = vmatprep.subr.mxu0 0.0
        %1173 = vmatpush1.msra.mxu0 %v1138
        %1174 = vmatprep.subr.mxu0 0.0
        %1175 = vmatpush1.msra.mxu0 %v1139
        %1176 = vmatprep.subr.mxu0 0.0
        %1177 = vmatpush1.msra.mxu0 %v1140
        %1178 = vmatprep.subr.mxu0 0.0
        %1179 = vmatpush1.msra.mxu0 %v1141
        %1180 = vmatprep.subr.mxu0 0.0
        %1181 = vmatpush1.msra.mxu0 %v1142
        %1182 = vmatprep.subr.mxu0 0.0
        %1183 = vmatpush1.msra.mxu0 0.0
        %1184 = vmatprep.subr.mxu0 0.0
        %1185 = vmatpush1.msra.mxu0 0.0
        %1186 = vmatprep.subr.mxu0 0.0
        %1187 = vmatpush1.msra.mxu0 0.0
        %1188 = vmatprep.subr.mxu0 0.0
        %1189 = vmatpush1.msra.mxu0 0.0
        %1190 = vmatprep.subr.mxu0 0.0
        %1191 = vmatpush1.msra.mxu0 0.0
        %1192 = vmatprep.subr.mxu0 0.0
        %1193 = vmatpush1.msra.mxu0 0.0
        %1194 = vmatprep.subr.mxu0 0.0
        %1195 = vmatpush1.msra.mxu0 0.0
        %1196 = vmatprep.subr.mxu0 0.0
        %1197 = vmatpush1.msra.mxu0 0.0
        %1198 = vmatprep.subr.mxu0 0.0
        %1199 = vmatpush1.msra.mxu0 0.0
        %1200 = vmatprep.subr.mxu0 0.0
        %1201 = vmatpush1.msra.mxu0 0.0
        %1202 = vmatprep.subr.mxu0 0.0
        %1203 = vmatpush1.msra.mxu0 0.0
        %1204 = vmatprep.subr.mxu0 0.0
        %1205 = vmatpush1.msra.mxu0 0.0
        %1206 = vmatprep.subr.mxu0 0.0
        %1207 = vmatpush1.msra.mxu0 0.0
        %1208 = vmatprep.subr.mxu0 0.0
        %1209 = vmatpush1.msra.mxu0 0.0
        %1210 = vmatprep.subr.mxu0 0.0
        %1211 = vmatpush1.msra.mxu0 0.0
        %1212 = vmatprep.subr.mxu0 0.0
        %1213 = vmatpush1.msra.mxu0 0.0
        %1214 = vmatprep.mubr.f32.mxu0 0.0
        %1215 = vmatmul.mubr.f32.gmra.mrb[0].mxu0 %v1120
        %v1216 = vpop.f32.mrb[0].mxu0
        %v1217 = vadd.f32 %v1148, %v1216
        %v1218 = vpop.f32.mrb[0].mxu0
        %1219 = vmatprep.mubr.f32.mxu0 0.0
        %1220 = vmatmul.mubr.f32.gmra.mrb[0].mxu0 %v1121
        %v1221 = vpop.f32.mrb[0].mxu0
        %v1222 = vadd.f32 %v1148, %v1221
        %v1223 = vpop.f32.mrb[0].mxu0
        %1224 = vmatprep.mubr.f32.mxu0 0.0
        %1225 = vmatmul.mubr.f32.gmra.mrb[0].mxu0 %v1122
        %v1226 = vpop.f32.mrb[0].mxu0
        %v1227 = vadd.f32 %v1148, %v1226
        %v1228 = vpop.f32.mrb[0].mxu0
        %1229 = vmatprep.mubr.f32.mxu0 0.0
        %1230 = vmatmul.mubr.f32.gmra.mrb[0].mxu0 %v1123
        %v1231 = vpop.f32.mrb[0].mxu0
        %v1232 = vadd.f32 %v1148, %v1231
        %v1233 = vpop.f32.mrb[0].mxu0
        %1234 = vmatprep.mubr.f32.mxu0 0.0
        %1235 = vmatmul.mubr.f32.gmra.mrb[0].mxu0 %v1124
        %v1236 = vpop.f32.mrb[0].mxu0
        %v1237 = vadd.f32 %v1148, %v1236
        %v1238 = vpop.f32.mrb[0].mxu0
        %1239 = vmatprep.mubr.f32.mxu0 0.0
        %1240 = vmatmul.mubr.f32.gmra.mrb[0].mxu0 %v1125
        %v1241 = vpop.f32.mrb[0].mxu0
        %v1242 = vadd.f32 %v1148, %v1241
        %v1243 = vpop.f32.mrb[0].mxu0
        %1244 = vmatprep.mubr.f32.mxu0 0.0
        %1245 = vmatmul.mubr.f32.gmra.mrb[0].mxu0 %v1126
        %v1246 = vpop.f32.mrb[0].mxu0
        %v1247 = vadd.f32 %v1148, %v1246
        %v1248 = vpop.f32.mrb[0].mxu0
        %1249 = vdwg.mxu0
        %v1250 = vsub.f32 0.0, %v1217
        %v1251 = vsub.f32 0.0, %v1222
        %v1252 = vsub.f32 0.0, %v1227
        %v1253 = vsub.f32 0.0, %v1232
        %v1254 = vsub.f32 0.0, %v1237
        %v1255 = vsub.f32 0.0, %v1242
        %v1256 = vsub.f32 0.0, %v1247
        %v1257 = vmul.f32 %v1250, 1.442695
        %v1258 = vpow.pop %v1257
        %v1259 = vmul.f32 %v1251, 1.442695
        %v1260 = vpow.pop %v1259
        %v1261 = vmul.f32 %v1252, 1.442695
        %v1262 = vpow.pop %v1261
        %v1263 = vmul.f32 %v1253, 1.442695
        %v1264 = vpow.pop %v1263
        %v1265 = vmul.f32 %v1254, 1.442695
        %v1266 = vpow.pop %v1265
        %v1267 = vmul.f32 %v1255, 1.442695
        %v1268 = vpow.pop %v1267
        %v1269 = vmul.f32 %v1256, 1.442695
        %v1270 = vpow.pop %v1269
        %v1271 = vadd.f32 %v1258, 1.0
        %v1272 = vadd.f32 %v1260, 1.0
        %v1273 = vadd.f32 %v1262, 1.0
        %v1274 = vadd.f32 %v1264, 1.0
        %v1275 = vadd.f32 %v1266, 1.0
        %v1276 = vadd.f32 %v1268, 1.0
        %v1277 = vadd.f32 %v1270, 1.0
        %v1278 = vrcp.pop %v1271
        %v1279 = vrcp.pop %v1272
        %v1280 = vrcp.pop %v1273
        %v1281 = vrcp.pop %v1274
        %v1282 = vrcp.pop %v1275
        %v1283 = vrcp.pop %v1276
        %v1284 = vrcp.pop %v1277
        %v1285 = vld [vmem:[%s5] sm:$0xff]
        %v1286 = vld [vmem:[%s5 + $0x8] sm:$0xff]
        %v1287 = vld [vmem:[%s5 + $0x10] sm:$0xff]
        %v1288 = vld [vmem:[%s5 + $0x18] sm:$0xff]
        %v1289 = vld [vmem:[%s5 + $0x20] sm:$0xff]
        %v1290 = vld [vmem:[%s5 + $0x28] sm:$0xff]
        %v1291 = vld [vmem:[%s5 + $0x30] sm:$0xff]
        %v1292 = vld [vmem:[%s5 + $0x38] sm:$0xff]
        %v1293 = vld [vmem:[%s5 + $0x40] sm:$0xff]
        %v1294 = vld [vmem:[%s5 + $0x48] sm:$0xff]
        %v1295 = vld [vmem:[%s5 + $0x50] sm:$0xff]
        %v1296 = vld [vmem:[%s5 + $0x58] sm:$0xff]
        %v1297 = vld [vmem:[%s5 + $0x60] sm:$0xff]
        %v1298 = vld [vmem:[%s5 + $0x68] sm:$0xff]
        %v1299 = vld [vmem:[%s5 + $0x70] sm:$0xff]
        %v1300 = vld [vmem:[%s5 + $0x78] sm:$0xff]
        %v1301 = vld [vmem:[%s6] sm:$0x1]
        %v1303 = vlaneseq
        %v1304 = vshrl.u32 %v1303, 7
        %v1305 = vsub.s32 0, %v1304
        %v1306 = vrot.slane %v1301, %v1305
        %1308 = vmatprep.subr.mxu0 0.0
        %1309 = vmatpush1.msra.mxu0 %v1285
        %1310 = vmatprep.subr.mxu0 0.0
        %1311 = vmatpush1.msra.mxu0 %v1286
        %1312 = vmatprep.subr.mxu0 0.0
        %1313 = vmatpush1.msra.mxu0 %v1287
        %1314 = vmatprep.subr.mxu0 0.0
        %1315 = vmatpush1.msra.mxu0 %v1288
        %1316 = vmatprep.subr.mxu0 0.0
        %1317 = vmatpush1.msra.mxu0 %v1289
        %1318 = vmatprep.subr.mxu0 0.0
        %1319 = vmatpush1.msra.mxu0 %v1290
        %1320 = vmatprep.subr.mxu0 0.0
        %1321 = vmatpush1.msra.mxu0 %v1291
        %1322 = vmatprep.subr.mxu0 0.0
        %1323 = vmatpush1.msra.mxu0 %v1292
        %1324 = vmatprep.subr.mxu0 0.0
        %1325 = vmatpush1.msra.mxu0 %v1293
        %1326 = vmatprep.subr.mxu0 0.0
        %1327 = vmatpush1.msra.mxu0 %v1294
        %1328 = vmatprep.subr.mxu0 0.0
        %1329 = vmatpush1.msra.mxu0 %v1295
        %1330 = vmatprep.subr.mxu0 0.0
        %1331 = vmatpush1.msra.mxu0 %v1296
        %1332 = vmatprep.subr.mxu0 0.0
        %1333 = vmatpush1.msra.mxu0 %v1297
        %1334 = vmatprep.subr.mxu0 0.0
        %1335 = vmatpush1.msra.mxu0 %v1298
        %1336 = vmatprep.subr.mxu0 0.0
        %1337 = vmatpush1.msra.mxu0 %v1299
        %1338 = vmatprep.subr.mxu0 0.0
        %1339 = vmatpush1.msra.mxu0 %v1300
        %1340 = vmatprep.subr.mxu0 0.0
        %1341 = vmatpush1.msra.mxu0 0.0
        %1342 = vmatprep.subr.mxu0 0.0
        %1343 = vmatpush1.msra.mxu0 0.0
        %1344 = vmatprep.subr.mxu0 0.0
        %1345 = vmatpush1.msra.mxu0 0.0
        %1346 = vmatprep.subr.mxu0 0.0
        %1347 = vmatpush1.msra.mxu0 0.0
        %1348 = vmatprep.subr.mxu0 0.0
        %1349 = vmatpush1.msra.mxu0 0.0
        %1350 = vmatprep.subr.mxu0 0.0
        %1351 = vmatpush1.msra.mxu0 0.0
        %1352 = vmatprep.subr.mxu0 0.0
        %1353 = vmatpush1.msra.mxu0 0.0
        %1354 = vmatprep.subr.mxu0 0.0
        %1355 = vmatpush1.msra.mxu0 0.0
        %1356 = vmatprep.subr.mxu0 0.0
        %1357 = vmatpush1.msra.mxu0 0.0
        %1358 = vmatprep.subr.mxu0 0.0
        %1359 = vmatpush1.msra.mxu0 0.0
        %1360 = vmatprep.subr.mxu0 0.0
        %1361 = vmatpush1.msra.mxu0 0.0
        %1362 = vmatprep.subr.mxu0 0.0
        %1363 = vmatpush1.msra.mxu0 0.0
        %1364 = vmatprep.subr.mxu0 0.0
        %1365 = vmatpush1.msra.mxu0 0.0
        %1366 = vmatprep.subr.mxu0 0.0
        %1367 = vmatpush1.msra.mxu0 0.0
        %1368 = vmatprep.subr.mxu0 0.0
        %1369 = vmatpush1.msra.mxu0 0.0
        %1370 = vmatprep.subr.mxu0 0.0
        %1371 = vmatpush1.msra.mxu0 0.0
        %1372 = vmatprep.mubr.f32.mxu0 0.0
        %1373 = vmatmul.mubr.f32.gmra.mrb[0].mxu0 %v1278
        %v1374 = vpop.f32.mrb[0].mxu0
        %v1375 = vadd.f32 %v1306, %v1374
        %v1376 = vpop.f32.mrb[0].mxu0
        %1377 = vmatprep.mubr.f32.mxu0 0.0
        %1378 = vmatmul.mubr.f32.gmra.mrb[0].mxu0 %v1279
        %v1379 = vpop.f32.mrb[0].mxu0
        %v1380 = vadd.f32 %v1306, %v1379
        %v1381 = vpop.f32.mrb[0].mxu0
        %1382 = vmatprep.mubr.f32.mxu0 0.0
        %1383 = vmatmul.mubr.f32.gmra.mrb[0].mxu0 %v1280
        %v1384 = vpop.f32.mrb[0].mxu0
        %v1385 = vadd.f32 %v1306, %v1384
        %v1386 = vpop.f32.mrb[0].mxu0
        %1387 = vmatprep.mubr.f32.mxu0 0.0
        %1388 = vmatmul.mubr.f32.gmra.mrb[0].mxu0 %v1281
        %v1389 = vpop.f32.mrb[0].mxu0
        %v1390 = vadd.f32 %v1306, %v1389
        %v1391 = vpop.f32.mrb[0].mxu0
        %1392 = vmatprep.mubr.f32.mxu0 0.0
        %1393 = vmatmul.mubr.f32.gmra.mrb[0].mxu0 %v1282
        %v1394 = vpop.f32.mrb[0].mxu0
        %v1395 = vadd.f32 %v1306, %v1394
        %v1396 = vpop.f32.mrb[0].mxu0
        %1397 = vmatprep.mubr.f32.mxu0 0.0
        %1398 = vmatmul.mubr.f32.gmra.mrb[0].mxu0 %v1283
        %v1399 = vpop.f32.mrb[0].mxu0
        %v1400 = vadd.f32 %v1306, %v1399
        %v1401 = vpop.f32.mrb[0].mxu0
        %1402 = vmatprep.mubr.f32.mxu0 0.0
        %1403 = vmatmul.mubr.f32.gmra.mrb[0].mxu0 %v1284
        %v1404 = vpop.f32.mrb[0].mxu0
        %v1405 = vadd.f32 %v1306, %v1404
        %v1406 = vpop.f32.mrb[0].mxu0
        %1407 = vdwg.mxu0
        %v1408 = vsub.f32 0.0, %v1375
        %v1409 = vsub.f32 0.0, %v1380
        %v1410 = vsub.f32 0.0, %v1385
        %v1411 = vsub.f32 0.0, %v1390
        %v1412 = vsub.f32 0.0, %v1395
        %v1413 = vsub.f32 0.0, %v1400
        %v1414 = vsub.f32 0.0, %v1405
        %v1415 = vmul.f32 %v1408, 1.442695
        %v1416 = vpow.pop %v1415
        %v1417 = vmul.f32 %v1409, 1.442695
        %v1418 = vpow.pop %v1417
        %v1419 = vmul.f32 %v1410, 1.442695
        %v1420 = vpow.pop %v1419
        %v1421 = vmul.f32 %v1411, 1.442695
        %v1422 = vpow.pop %v1421
        %v1423 = vmul.f32 %v1412, 1.442695
        %v1424 = vpow.pop %v1423
        %v1425 = vmul.f32 %v1413, 1.442695
        %v1426 = vpow.pop %v1425
        %v1427 = vmul.f32 %v1414, 1.442695
        %v1428 = vpow.pop %v1427
        %v1429 = vadd.f32 %v1416, 1.0
        %v1430 = vadd.f32 %v1418, 1.0
        %v1431 = vadd.f32 %v1420, 1.0
        %v1432 = vadd.f32 %v1422, 1.0
        %v1433 = vadd.f32 %v1424, 1.0
        %v1434 = vadd.f32 %v1426, 1.0
        %v1435 = vadd.f32 %v1428, 1.0
        %v1436 = vrcp.pop %v1429
        %v1437 = vrcp.pop %v1430
        %v1438 = vrcp.pop %v1431
        %v1439 = vrcp.pop %v1432
        %v1440 = vrcp.pop %v1433
        %v1441 = vrcp.pop %v1434
        %v1442 = vrcp.pop %v1435
        %v1443 = vld [vmem:[#allocation2] sm:$0xff]
        %v1444 = vld [vmem:[#allocation2 + $0x8] sm:$0xff]
        %v1445 = vld [vmem:[#allocation2 + $0x10] sm:$0xff]
        %v1446 = vld [vmem:[#allocation2 + $0x18] sm:$0xff]
        %v1447 = vld [vmem:[#allocation2 + $0x20] sm:$0xff]
        %v1448 = vld [vmem:[#allocation2 + $0x28] sm:$0xff]
        %v1449 = vld [vmem:[#allocation2 + $0x30] sm:$0xff]
        %v1450 = vld [vmem:[#allocation2 + $0x38] sm:$0xff]
        %v1451 = vld [vmem:[#allocation2 + $0x40] sm:$0xff]
        %v1452 = vld [vmem:[#allocation2 + $0x48] sm:$0xff]
        %v1453 = vld [vmem:[#allocation2 + $0x50] sm:$0xff]
        %v1454 = vld [vmem:[#allocation2 + $0x58] sm:$0xff]
        %v1455 = vld [vmem:[#allocation2 + $0x60] sm:$0xff]
        %v1456 = vld [vmem:[#allocation2 + $0x68] sm:$0xff]
        %v1457 = vld [vmem:[#allocation2 + $0x70] sm:$0xff]
        %v1458 = vld [vmem:[#allocation2 + $0x78] sm:$0xff]
        %v1459 = vld [vmem:[%s8] sm:$0x1]
        %v1461 = vlaneseq
        %v1462 = vshrl.u32 %v1461, 7
        %v1463 = vsub.s32 0, %v1462
        %v1464 = vrot.slane %v1459, %v1463
        %1466 = vmatprep.subr.mxu0 0.0
        %1467 = vmatpush1.msra.mxu0 %v1443
        %1468 = vmatprep.subr.mxu0 0.0
        %1469 = vmatpush1.msra.mxu0 %v1444
        %1470 = vmatprep.subr.mxu0 0.0
        %1471 = vmatpush1.msra.mxu0 %v1445
        %1472 = vmatprep.subr.mxu0 0.0
        %1473 = vmatpush1.msra.mxu0 %v1446
        %1474 = vmatprep.subr.mxu0 0.0
        %1475 = vmatpush1.msra.mxu0 %v1447
        %1476 = vmatprep.subr.mxu0 0.0
        %1477 = vmatpush1.msra.mxu0 %v1448
        %1478 = vmatprep.subr.mxu0 0.0
        %1479 = vmatpush1.msra.mxu0 %v1449
        %1480 = vmatprep.subr.mxu0 0.0
        %1481 = vmatpush1.msra.mxu0 %v1450
        %1482 = vmatprep.subr.mxu0 0.0
        %1483 = vmatpush1.msra.mxu0 %v1451
        %1484 = vmatprep.subr.mxu0 0.0
        %1485 = vmatpush1.msra.mxu0 %v1452
        %1486 = vmatprep.subr.mxu0 0.0
        %1487 = vmatpush1.msra.mxu0 %v1453
        %1488 = vmatprep.subr.mxu0 0.0
        %1489 = vmatpush1.msra.mxu0 %v1454
        %1490 = vmatprep.subr.mxu0 0.0
        %1491 = vmatpush1.msra.mxu0 %v1455
        %1492 = vmatprep.subr.mxu0 0.0
        %1493 = vmatpush1.msra.mxu0 %v1456
        %1494 = vmatprep.subr.mxu0 0.0
        %1495 = vmatpush1.msra.mxu0 %v1457
        %1496 = vmatprep.subr.mxu0 0.0
        %1497 = vmatpush1.msra.mxu0 %v1458
        %1498 = vmatprep.subr.mxu0 0.0
        %1499 = vmatpush1.msra.mxu0 0.0
        %1500 = vmatprep.subr.mxu0 0.0
        %1501 = vmatpush1.msra.mxu0 0.0
        %1502 = vmatprep.subr.mxu0 0.0
        %1503 = vmatpush1.msra.mxu0 0.0
        %1504 = vmatprep.subr.mxu0 0.0
        %1505 = vmatpush1.msra.mxu0 0.0
        %1506 = vmatprep.subr.mxu0 0.0
        %1507 = vmatpush1.msra.mxu0 0.0
        %1508 = vmatprep.subr.mxu0 0.0
        %1509 = vmatpush1.msra.mxu0 0.0
        %1510 = vmatprep.subr.mxu0 0.0
        %1511 = vmatpush1.msra.mxu0 0.0
        %1512 = vmatprep.subr.mxu0 0.0
        %1513 = vmatpush1.msra.mxu0 0.0
        %1514 = vmatprep.subr.mxu0 0.0
        %1515 = vmatpush1.msra.mxu0 0.0
        %1516 = vmatprep.subr.mxu0 0.0
        %1517 = vmatpush1.msra.mxu0 0.0
        %1518 = vmatprep.subr.mxu0 0.0
        %1519 = vmatpush1.msra.mxu0 0.0
        %1520 = vmatprep.subr.mxu0 0.0
        %1521 = vmatpush1.msra.mxu0 0.0
        %1522 = vmatprep.subr.mxu0 0.0
        %1523 = vmatpush1.msra.mxu0 0.0
        %1524 = vmatprep.subr.mxu0 0.0
        %1525 = vmatpush1.msra.mxu0 0.0
        %1526 = vmatprep.subr.mxu0 0.0
        %1527 = vmatpush1.msra.mxu0 0.0
        %1528 = vmatprep.subr.mxu0 0.0
        %1529 = vmatpush1.msra.mxu0 0.0
        %1530 = vmatprep.mubr.f32.mxu0 0.0
        %1531 = vmatmul.mubr.f32.gmra.mrb[0].mxu0 %v1436
        %v1532 = vpop.f32.mrb[0].mxu0
        %v1533 = vadd.f32 %v1464, %v1532
        %v1534 = vpop.f32.mrb[0].mxu0
        %1535 = vmatprep.mubr.f32.mxu0 0.0
        %1536 = vmatmul.mubr.f32.gmra.mrb[0].mxu0 %v1437
        %v1537 = vpop.f32.mrb[0].mxu0
        %v1538 = vadd.f32 %v1464, %v1537
        %v1539 = vpop.f32.mrb[0].mxu0
        %1540 = vmatprep.mubr.f32.mxu0 0.0
        %1541 = vmatmul.mubr.f32.gmra.mrb[0].mxu0 %v1438
        %v1542 = vpop.f32.mrb[0].mxu0
        %v1543 = vadd.f32 %v1464, %v1542
        %v1544 = vpop.f32.mrb[0].mxu0
        %1545 = vmatprep.mubr.f32.mxu0 0.0
        %1546 = vmatmul.mubr.f32.gmra.mrb[0].mxu0 %v1439
        %v1547 = vpop.f32.mrb[0].mxu0
        %v1548 = vadd.f32 %v1464, %v1547
        %v1549 = vpop.f32.mrb[0].mxu0
        %1550 = vmatprep.mubr.f32.mxu0 0.0
        %1551 = vmatmul.mubr.f32.gmra.mrb[0].mxu0 %v1440
        %v1552 = vpop.f32.mrb[0].mxu0
        %v1553 = vadd.f32 %v1464, %v1552
        %v1554 = vpop.f32.mrb[0].mxu0
        %1555 = vmatprep.mubr.f32.mxu0 0.0
        %1556 = vmatmul.mubr.f32.gmra.mrb[0].mxu0 %v1441
        %v1557 = vpop.f32.mrb[0].mxu0
        %v1558 = vadd.f32 %v1464, %v1557
        %v1559 = vpop.f32.mrb[0].mxu0
        %1560 = vmatprep.mubr.f32.mxu0 0.0
        %1561 = vmatmul.mubr.f32.gmra.mrb[0].mxu0 %v1442
        %v1562 = vpop.f32.mrb[0].mxu0
        %v1563 = vadd.f32 %v1464, %v1562
        %v1564 = vpop.f32.mrb[0].mxu0
        %1565 = vdwg.mxu0
        %1566 = vst [vmem:[%s349 + $0x38] sm:$0xff] %v1533
        %1567 = vst [vmem:[%s349 + $0x40] sm:$0xff] %v1538
        %1568 = vst [vmem:[%s349 + $0x48] sm:$0xff] %v1543
        %1569 = vst [vmem:[%s349 + $0x50] sm:$0xff] %v1548
        %1570 = vst [vmem:[%s349 + $0x58] sm:$0xff] %v1553
        %1571 = vst [vmem:[%s349 + $0x60] sm:$0xff] %v1558
        %1572 = vst [vmem:[%s349 + $0x68] sm:$0xff] %v1563
        %s1573 = smul.u32 14, %s21
        %p1574 = scmp.lt.s32.totalorder %s1573, 27
        %s1575 = scalar_select %p1574, %s1573, 27
        %s1576 = smul.addr %s1575, 8
        %s1577 = scalar_lea.vmem %s9, %s1576
        // Predicated region
        $region61: #{_sae_forward_impl.1} parent=55 // pred_check
          %p1578 = pneg %p233
        $region62: #{_sae_forward_impl.1} parent=55 // pred_check_branch
          %1580 = sbr.rel (%p1578) target = $region64
        $region63: #{_sae_forward_impl.1} parent=55 // pred_region
          %s1581 = smul.u32 14, %s21
        $region64: #{_sae_forward_impl.1} parent=55 // pred_fallthru
          _
      $region56: #{_sae_forward_impl.1} parent=5 // pred_fallthru
        _
      %p1582 = scmp.le.s32.totalorder 2, %s16
      // Predicated region
      $region65: #{_sae_forward_impl.1} parent=5 // pred_check
        %p1583 = pneg %p1582
      $region66: #{_sae_forward_impl.1} parent=5 // pred_check_branch
        %1585 = sbr.rel (%p1583) target = $region68
      $region67: #{_sae_forward_impl.1} parent=5 // pred_region
        %s1586 = ssub.s32 %s16, 2
        // Predicated region
        $region69: #{_sae_forward_impl.1} parent=67 // pred_check
          %p1587 = pneg %p239
        $region70: #{_sae_forward_impl.1} parent=67 // pred_check_branch
          %1589 = sbr.rel (%p1587) target = $region72
        $region71: #{_sae_forward_impl.1} parent=67 // pred_region
          %s1590 = smul.u32 14, %s22
          %p1591 = scmp.lt.s32.totalorder %s1590, 27
          %s1592 = scalar_select %p1591, %s1590, 27
          %s1593 = smul.addr %s1592, 8
          %s1594 = scalar_lea.vmem %s9, %s1593
        $region72: #{_sae_forward_impl.1} parent=67 // pred_fallthru
          _
      $region68: #{_sae_forward_impl.1} parent=5 // pred_fallthru
        _
    $region6: #{_sae_forward_impl.1} parent=1 // loop_footer
      %s20 = sadd.s32 1, %s16
    $region7: #{_sae_forward_impl.1} parent=1 // loop_footer_branch
      %15 = sbr.rel target = $region3
    $region8: #{_sae_forward_impl.1} parent=1 // loop_exit
      _
    %1595 = vsyncpa [#allocation3], 1
    %s1596 = scalar_lea.sflag [#allocation3], 1
    %1597 = vsyncpa %s1596, 1

</llo_original>
